<compile_context>
chip_gen: v7x
topology: tpu7x:2x2x1
jax: 0.10.0
libtpu: 0.0.40
codegen_flags: <defaults>
</compile_context>

<pallas_src>
import jax
import jax.numpy as jnp
import numpy as np
from jax import lax
from jax.experimental import pallas as pl
from jax.experimental.pallas import tpu as pltpu

_LANES = 128


def _sigmoid(x):
    return 1.0 / (1.0 + jnp.exp(-x))


def _lovasz_kernel(x_ref, fg_ref, xcol_ref, fgcol_ref, out_ref):
    # x_ref, fg_ref   : (R, 128)  row-major logits / foreground of the image
    # xcol_ref, fgcol_ref : (128, 1) this step's i-chunk, sublane-major
    # out_ref         : (1, 128)  per-image loss accumulator (lane-broadcast)
    ci = pl.program_id(1)
    n_rows = pl.num_programs(1)

    @pl.when(ci == 0)
    def _init():
        out_ref[...] = jnp.zeros_like(out_ref)

    x_i = xcol_ref[...]                                   # (128, 1)
    f_i = fgcol_ref[...]                                  # (128, 1)
    e_i = jnp.abs(f_i - _sigmoid(x_i))                    # (128, 1) errors of i-chunk
    e_i_b = jnp.broadcast_to(e_i, (_LANES, _LANES))       # hoisted lane broadcast

    # Tie-break mask used only on the diagonal j-row: include tie iff j <= i.
    si = lax.broadcasted_iota(jnp.int32, (_LANES, _LANES), 0)   # i offset (sublane)
    li = lax.broadcasted_iota(jnp.int32, (_LANES, _LANES), 1)   # j offset (lane)
    tri = li <= si

    def tile(rj, carry, mode):
        rank_a, cf_a, fg_sum = carry
        x_j = x_ref[pl.ds(rj, 1), :]                      # (1, 128)
        f_j = fg_ref[pl.ds(rj, 1), :]                     # (1, 128)
        e_j = jnp.abs(f_j - _sigmoid(x_j))                # (1, 128)
        if mode == "ge":          # every j in this row precedes the i-chunk
            m = e_j >= e_i_b
        elif mode == "gt":        # every j in this row follows the i-chunk
            m = e_j > e_i_b
        else:                     # diagonal row: index-stable tie break
            m = (e_j > e_i_b) | ((e_j == e_i_b) & tri)
        rank_a = rank_a + jnp.sum(jnp.where(m, 1.0, 0.0), axis=1, keepdims=True)
        cf_a = cf_a + jnp.sum(jnp.where(m, f_j, 0.0), axis=1, keepdims=True)
        return rank_a, cf_a, fg_sum + f_j

    zeros_col = jnp.zeros((_LANES, 1), jnp.float32)
    zeros_row = jnp.zeros((1, _LANES), jnp.float32)
    carry = (zeros_col, zeros_col, zeros_row)
    carry = lax.fori_loop(0, ci, lambda r, c: tile(r, c, "ge"), carry)
    carry = tile(ci, carry, "diag")
    rank, c_f, fg_sum = lax.fori_loop(
        ci + 1, n_rows, lambda r, c: tile(r, c, "gt"), carry)

    gts = jnp.sum(fg_sum)                 # total foreground pixels of the image
    c_u = rank - c_f                      # cumulative (1 - fg) at sorted position

    jac_incl = 1.0 - (gts - c_f) / (gts + c_u)
    c_f_ex = c_f - f_i
    c_u_ex = c_u - (1.0 - f_i)
    denom_ex = gts + c_u_ex
    jac_excl = jnp.where(denom_ex > 0.0, 1.0 - (gts - c_f_ex) / denom_ex, 0.0)

    loss_ci = jnp.sum(e_i * (jac_incl - jac_excl))        # this chunk's contribution
    out_ref[...] += loss_ci


def lovasz_seg_loss(logits, target, classes=(1,), per_image=True):
    """Pallas implementation of LovaszSegLoss.forward (classes=[1], per_image=True)."""
    assert per_image, "only per_image=True is implemented (matches the module default)"
    assert len(classes) == 1, "module default is classes=[1]"
    c = classes[0]

    B, C, H, W = logits.shape
    N = H * W
    R = (N + _LANES - 1) // _LANES
    Np = R * _LANES

    # Glue: slice class-c logits, precompute foreground mask in the wrapper.
    x = logits[:, c, :, :].reshape(B, N).astype(jnp.float32)
    fg = (target.reshape(B, N) == c).astype(jnp.float32)
    if Np != N:
        # exact padding: sigmoid(-1e30) == 0 and fg == 0 -> error == 0, so padded
        # pixels never change real ranks/counts and contribute 0 to the loss.
        x = jnp.pad(x, ((0, 0), (0, Np - N)), constant_values=-1e30)
        fg = jnp.pad(fg, ((0, 0), (0, Np - N)), constant_values=0.0)

    x_row = x.reshape(B, R, _LANES)
    fg_row = fg.reshape(B, R, _LANES)
    x_col = x.reshape(B, R, _LANES, 1)
    fg_col = fg.reshape(B, R, _LANES, 1)

    out = pl.pallas_call(
        _lovasz_kernel,
        out_shape=jax.ShapeDtypeStruct((B, 1, _LANES), jnp.float32),
        grid_spec=pltpu.PrefetchScalarGridSpec(
            num_scalar_prefetch=0,
            grid=(B, R),
            in_specs=[
                pl.BlockSpec((None, R, _LANES), lambda b, i: (b, 0, 0)),
                pl.BlockSpec((None, R, _LANES), lambda b, i: (b, 0, 0)),
                pl.BlockSpec((None, None, _LANES, 1), lambda b, i: (b, i, 0, 0)),
                pl.BlockSpec((None, None, _LANES, 1), lambda b, i: (b, i, 0, 0)),
            ],
            out_specs=pl.BlockSpec((None, 1, _LANES), lambda b, i: (b, 0, 0)),
        ),
        compiler_params=pltpu.CompilerParams(
            # batch axis parallel (v7x 2-TC sharding is safe: per-image outputs),
            # chunk axis arbitrary (it accumulates into the per-image block).
            dimension_semantics=("parallel", "arbitrary"),
            # explicit VMEM budget: fits all generations (v5e default is only 16 MiB);
            # per-image resident blocks are ~16*N bytes, raise for very large images.
            vmem_limit_bytes=32 * 1024 * 1024,
        ),
    )(x_row, fg_row, x_col, fg_col)

    return jnp.mean(out[:, 0, 0])


def lovasz_ref(logits, target, classes=(1,)):
    """Pure-JAX reference (classic sort-based Lovasz-softmax, per_image=True)."""
    B, C, H, W = logits.shape
    probas = _sigmoid(logits.astype(jnp.float32))
    total = 0.0
    for b in range(B):
        p = jnp.transpose(probas[b], (1, 2, 0)).reshape(-1, C)
        l = target[b].reshape(-1)
        cls_losses = []
        for c in classes:
            fg = (l == c).astype(jnp.float32)
            pred = p[:, c]
            errors = jnp.abs(fg - pred)
            order = jnp.argsort(-errors)          # descending, stable
            e_s = errors[order]
            f_s = fg[order]
            gts = jnp.sum(f_s)
            inter = gts - jnp.cumsum(f_s)
            union = gts + jnp.cumsum(1.0 - f_s)
            jac = 1.0 - inter / union
            jac = jnp.concatenate([jac[:1], jac[1:] - jac[:-1]])
            cls_losses.append(jnp.sum(e_s * jac))
        total = total + sum(cls_losses) / len(cls_losses)
    return total / B


if __name__ == "__main__":
    key = jax.random.PRNGKey(0)
    k1, k2, k3, k4 = jax.random.split(key, 4)

    # Primary shape: B=2, C=4, H=W=16 (N = 256 pixels per image).
    B, C, H, W = 2, 4, 16, 16
    logits = jax.random.normal(k1, (B, C, H, W), dtype=jnp.float32)
    target = jax.random.randint(k2, (B, H, W), 0, C, dtype=jnp.int32)

    loss = jax.block_until_ready(lovasz_seg_loss(logits, target))
    ref = jax.block_until_ready(lovasz_ref(logits, target))
    assert np.allclose(np.asarray(loss), np.asarray(ref), rtol=1e-4, atol=1e-5), (
        float(loss), float(ref))

    # Second shape exercising the pad-to-128 path (H*W = 100 -> padded to 128).
    B2, C2, H2, W2 = 2, 3, 10, 10
    logits2 = jax.random.normal(k3, (B2, C2, H2, W2), dtype=jnp.float32)
    target2 = jax.random.randint(k4, (B2, H2, W2), 0, C2, dtype=jnp.int32)

    loss2 = jax.block_until_ready(lovasz_seg_loss(logits2, target2))
    ref2 = jax.block_until_ready(lovasz_ref(logits2, target2))
    assert np.allclose(np.asarray(loss2), np.asarray(ref2), rtol=1e-4, atol=1e-5), (
        float(loss2), float(ref2))

    print("KERNEL_OK")
</pallas_src>

<mosaic_0001>
module attributes {stable_mosaic.version = 11 : i64} {
  func.func @_lovasz_kernel(%arg0: i32, %arg1: i32, %arg2: memref<1x2x128xf32, #tpu.memory_space<vmem>>, %arg3: memref<1x2x128xf32, #tpu.memory_space<vmem>>, %arg4: memref<1x1x128x1xf32, #tpu.memory_space<vmem>>, %arg5: memref<1x1x128x1xf32, #tpu.memory_space<vmem>>, %arg6: memref<1x1x128xf32, #tpu.memory_space<vmem>>) attributes {dimension_semantics = [#tpu.dimension_semantics<parallel>, #tpu.dimension_semantics<arbitrary>], iteration_bounds = array<i64: 2, 2>, scalar_prefetch = 0 : i64, scratch_operands = 0 : i64, tpu.core_type = #tpu.core_type<tc>, window_params = [{transform_indices = @transform_0, window_bounds = array<i64: 1, 2, 128>}, {transform_indices = @transform_1, window_bounds = array<i64: 1, 2, 128>}, {transform_indices = @transform_2, window_bounds = array<i64: 1, 1, 128, 1>}, {transform_indices = @transform_3, window_bounds = array<i64: 1, 1, 128, 1>}, {transform_indices = @transform_4, window_bounds = array<i64: 1, 1, 128>}]} {
    %c0_i32 = arith.constant 0 : i32
    %0 = arith.cmpi eq, %arg1, %c0_i32 : i32
    %1 = arith.extui %0 : i1 to i32
    %c0_i32_0 = arith.constant 0 : i32
    %2 = arith.cmpi ne, %1, %c0_i32_0 : i32
    scf.if %2 {
      %cst_40 = arith.constant 0.000000e+00 : f32
      %105 = vector.broadcast %cst_40 : f32 to vector<1x128xf32>
      %c0_41 = arith.constant 0 : index
      %c0_42 = arith.constant 0 : index
      %c0_43 = arith.constant 0 : index
      %106 = vector.load %arg6[%c0_41, %c0_42, %c0_43] : memref<1x1x128xf32, #tpu.memory_space<vmem>>, vector<1x1x128xf32>
      %107 = vector.shape_cast %106 : vector<1x1x128xf32> to vector<1x128xf32>
      %108 = vector.shape_cast %105 : vector<1x128xf32> to vector<1x1x128xf32>
      tpu.vector_store %arg6[%c0_41, %c0_42, %c0_43], %108 {strides = array<i32>} : memref<1x1x128xf32, #tpu.memory_space<vmem>>, vector<1x1x128xf32>,
    } else {
    }
    %c0 = arith.constant 0 : index
    %c0_1 = arith.constant 0 : index
    %c0_2 = arith.constant 0 : index
    %c0_3 = arith.constant 0 : index
    %3 = vector.load %arg4[%c0, %c0_1, %c0_2, %c0_3] : memref<1x1x128x1xf32, #tpu.memory_space<vmem>>, vector<1x1x128x1xf32>
    %4 = vector.shape_cast %3 : vector<1x1x128x1xf32> to vector<128x1xf32>
    %c0_4 = arith.constant 0 : index
    %c0_5 = arith.constant 0 : index
    %c0_6 = arith.constant 0 : index
    %c0_7 = arith.constant 0 : index
    %5 = vector.load %arg5[%c0_4, %c0_5, %c0_6, %c0_7] : memref<1x1x128x1xf32, #tpu.memory_space<vmem>>, vector<1x1x128x1xf32>
    %6 = vector.shape_cast %5 : vector<1x1x128x1xf32> to vector<128x1xf32>
    %cst = arith.constant 0.000000e+00 : f32
    %7 = vector.broadcast %cst : f32 to vector<128x1xf32>
    %8 = arith.subf %7, %4 : vector<128x1xf32>
    %9 = math.exp %8 : vector<128x1xf32>
    %cst_8 = arith.constant 1.000000e+00 : f32
    %10 = vector.broadcast %cst_8 : f32 to vector<128x1xf32>
    %11 = arith.addf %10, %9 : vector<128x1xf32>
    %cst_9 = arith.constant 1.000000e+00 : f32
    %12 = vector.broadcast %cst_9 : f32 to vector<128x1xf32>
    %13 = arith.divf %12, %11 : vector<128x1xf32>
    %14 = arith.subf %6, %13 : vector<128x1xf32>
    %15 = math.absf %14 : vector<128x1xf32>
    %16 = vector.shape_cast %15 : vector<128x1xf32> to vector<128x1xf32>
    %17 = vector.broadcast %16 : vector<128x1xf32> to vector<128x128xf32>
    %18 = tpu.iota {dimensions = array<i32: 0>} : vector<128x128xi32>
    %19 = tpu.iota {dimensions = array<i32: 1>} : vector<128x128xi32>
    %20 = arith.cmpi sle, %19, %18 : vector<128x128xi32>
    %cst_10 = arith.constant 0.000000e+00 : f32
    %21 = vector.broadcast %cst_10 : f32 to vector<128x1xf32>
    %cst_11 = arith.constant 0.000000e+00 : f32
    %22 = vector.broadcast %cst_11 : f32 to vector<1x128xf32>
    %c0_i32_12 = arith.constant 0 : i32
    %23 = arith.subi %arg1, %c0_i32_12 : i32
    %24 = arith.addi %c0_i32_12, %23 : i32
    %c1_i32 = arith.constant 1 : i32
    %25:3 = scf.for %arg7 = %c0_i32_12 to %24 step %c1_i32 iter_args(%arg8 = %21, %arg9 = %21, %arg10 = %22) -> (vector<128x1xf32>, vector<128x1xf32>, vector<1x128xf32>)  : i32 {
      %c0_40 = arith.constant 0 : index
      %105 = arith.index_cast %arg7 : i32 to index
      %c0_41 = arith.constant 0 : index
      %106 = vector.load %arg2[%c0_40, %105, %c0_41] : memref<1x2x128xf32, #tpu.memory_space<vmem>>, vector<1x1x128xf32>
      %107 = vector.shape_cast %106 : vector<1x1x128xf32> to vector<1x128xf32>
      %c0_42 = arith.constant 0 : index
      %108 = arith.index_cast %arg7 : i32 to index
      %c0_43 = arith.constant 0 : index
      %109 = vector.load %arg3[%c0_42, %108, %c0_43] : memref<1x2x128xf32, #tpu.memory_space<vmem>>, vector<1x1x128xf32>
      %110 = vector.shape_cast %109 : vector<1x1x128xf32> to vector<1x128xf32>
      %cst_44 = arith.constant 0.000000e+00 : f32
      %111 = vector.broadcast %cst_44 : f32 to vector<1x128xf32>
      %112 = arith.subf %111, %107 : vector<1x128xf32>
      %113 = math.exp %112 : vector<1x128xf32>
      %cst_45 = arith.constant 1.000000e+00 : f32
      %114 = vector.broadcast %cst_45 : f32 to vector<1x128xf32>
      %115 = arith.addf %114, %113 : vector<1x128xf32>
      %cst_46 = arith.constant 1.000000e+00 : f32
      %116 = vector.broadcast %cst_46 : f32 to vector<1x128xf32>
      %117 = arith.divf %116, %115 : vector<1x128xf32>
      %118 = arith.subf %110, %117 : vector<1x128xf32>
      %119 = math.absf %118 : vector<1x128xf32>
      %120 = vector.broadcast %119 : vector<1x128xf32> to vector<128x128xf32>
      %121 = arith.cmpf oge, %120, %17 : vector<128x128xf32>
      %cst_47 = arith.constant 1.000000e+00 : f32
      %cst_48 = arith.constant 0.000000e+00 : f32
      %122 = vector.broadcast %cst_47 : f32 to vector<128x128xf32>
      %123 = vector.broadcast %cst_48 : f32 to vector<128x128xf32>
      %124 = arith.select %121, %122, %123 : vector<128x128xi1>, vector<128x128xf32>
      %cst_49 = arith.constant dense<0.000000e+00> : vector<128xf32>
      %125 = vector.multi_reduction <add>, %124, %cst_49 [1] : vector<128x128xf32> to vector<128xf32>
      %126 = vector.shape_cast %125 : vector<128xf32> to vector<128x1xf32>
      %127 = arith.addf %arg8, %126 : vector<128x1xf32>
      %cst_50 = arith.constant 0.000000e+00 : f32
      %128 = vector.shape_cast %110 : vector<1x128xf32> to vector<1x128xf32>
      %129 = vector.broadcast %128 : vector<1x128xf32> to vector<128x128xf32>
      %130 = vector.broadcast %cst_50 : f32 to vector<128x128xf32>
      %131 = arith.select %121, %129, %130 : vector<128x128xi1>, vector<128x128xf32>
      %cst_51 = arith.constant dense<0.000000e+00> : vector<128xf32>
      %132 = vector.multi_reduction <add>, %131, %cst_51 [1] : vector<128x128xf32> to vector<128xf32>
      %133 = vector.shape_cast %132 : vector<128xf32> to vector<128x1xf32>
      %134 = arith.addf %arg9, %133 : vector<128x1xf32>
      %135 = arith.addf %arg10, %110 : vector<1x128xf32>
      scf.yield %127, %134, %135 : vector<128x1xf32>, vector<128x1xf32>, vector<1x128xf32>
    }
    %c0_13 = arith.constant 0 : index
    %26 = arith.index_cast %arg1 : i32 to index
    %c0_14 = arith.constant 0 : index
    %27 = vector.load %arg2[%c0_13, %26, %c0_14] : memref<1x2x128xf32, #tpu.memory_space<vmem>>, vector<1x1x128xf32>
    %28 = vector.shape_cast %27 : vector<1x1x128xf32> to vector<1x128xf32>
    %c0_15 = arith.constant 0 : index
    %29 = arith.index_cast %arg1 : i32 to index
    %c0_16 = arith.constant 0 : index
    %30 = vector.load %arg3[%c0_15, %29, %c0_16] : memref<1x2x128xf32, #tpu.memory_space<vmem>>, vector<1x1x128xf32>
    %31 = vector.shape_cast %30 : vector<1x1x128xf32> to vector<1x128xf32>
    %cst_17 = arith.constant 0.000000e+00 : f32
    %32 = vector.broadcast %cst_17 : f32 to vector<1x128xf32>
    %33 = arith.subf %32, %28 : vector<1x128xf32>
    %34 = math.exp %33 : vector<1x128xf32>
    %cst_18 = arith.constant 1.000000e+00 : f32
    %35 = vector.broadcast %cst_18 : f32 to vector<1x128xf32>
    %36 = arith.addf %35, %34 : vector<1x128xf32>
    %cst_19 = arith.constant 1.000000e+00 : f32
    %37 = vector.broadcast %cst_19 : f32 to vector<1x128xf32>
    %38 = arith.divf %37, %36 : vector<1x128xf32>
    %39 = arith.subf %31, %38 : vector<1x128xf32>
    %40 = math.absf %39 : vector<1x128xf32>
    %41 = vector.broadcast %40 : vector<1x128xf32> to vector<128x128xf32>
    %42 = arith.cmpf ogt, %41, %17 : vector<128x128xf32>
    %43 = vector.broadcast %40 : vector<1x128xf32> to vector<128x128xf32>
    %44 = arith.cmpf oeq, %43, %17 : vector<128x128xf32>
    %45 = arith.andi %44, %20 : vector<128x128xi1>
    %46 = arith.ori %42, %45 : vector<128x128xi1>
    %cst_20 = arith.constant 1.000000e+00 : f32
    %cst_21 = arith.constant 0.000000e+00 : f32
    %47 = vector.broadcast %cst_20 : f32 to vector<128x128xf32>
    %48 = vector.broadcast %cst_21 : f32 to vector<128x128xf32>
    %49 = arith.select %46, %47, %48 : vector<128x128xi1>, vector<128x128xf32>
    %cst_22 = arith.constant dense<0.000000e+00> : vector<128xf32>
    %50 = vector.multi_reduction <add>, %49, %cst_22 [1] : vector<128x128xf32> to vector<128xf32>
    %51 = vector.shape_cast %50 : vector<128xf32> to vector<128x1xf32>
    %52 = arith.addf %25#0, %51 : vector<128x1xf32>
    %cst_23 = arith.constant 0.000000e+00 : f32
    %53 = vector.shape_cast %31 : vector<1x128xf32> to vector<1x128xf32>
    %54 = vector.broadcast %53 : vector<1x128xf32> to vector<128x128xf32>
    %55 = vector.broadcast %cst_23 : f32 to vector<128x128xf32>
    %56 = arith.select %46, %54, %55 : vector<128x128xi1>, vector<128x128xf32>
    %cst_24 = arith.constant dense<0.000000e+00> : vector<128xf32>
    %57 = vector.multi_reduction <add>, %56, %cst_24 [1] : vector<128x128xf32> to vector<128xf32>
    %58 = vector.shape_cast %57 : vector<128xf32> to vector<128x1xf32>
    %59 = arith.addf %25#1, %58 : vector<128x1xf32>
    %60 = arith.addf %25#2, %31 : vector<1x128xf32>
    %c1_i32_25 = arith.constant 1 : i32
    %61 = arith.addi %arg1, %c1_i32_25 : i32
    %c2_i32 = arith.constant 2 : i32
    %62 = arith.subi %c2_i32, %61 : i32
    %63 = arith.addi %61, %62 : i32
    %c1_i32_26 = arith.constant 1 : i32
    %64:3 = scf.for %arg7 = %61 to %63 step %c1_i32_26 iter_args(%arg8 = %52, %arg9 = %59, %arg10 = %60) -> (vector<128x1xf32>, vector<128x1xf32>, vector<1x128xf32>)  : i32 {
      %c0_40 = arith.constant 0 : index
      %105 = arith.index_cast %arg7 : i32 to index
      %c0_41 = arith.constant 0 : index
      %106 = vector.load %arg2[%c0_40, %105, %c0_41] : memref<1x2x128xf32, #tpu.memory_space<vmem>>, vector<1x1x128xf32>
      %107 = vector.shape_cast %106 : vector<1x1x128xf32> to vector<1x128xf32>
      %c0_42 = arith.constant 0 : index
      %108 = arith.index_cast %arg7 : i32 to index
      %c0_43 = arith.constant 0 : index
      %109 = vector.load %arg3[%c0_42, %108, %c0_43] : memref<1x2x128xf32, #tpu.memory_space<vmem>>, vector<1x1x128xf32>
      %110 = vector.shape_cast %109 : vector<1x1x128xf32> to vector<1x128xf32>
      %cst_44 = arith.constant 0.000000e+00 : f32
      %111 = vector.broadcast %cst_44 : f32 to vector<1x128xf32>
      %112 = arith.subf %111, %107 : vector<1x128xf32>
      %113 = math.exp %112 : vector<1x128xf32>
      %cst_45 = arith.constant 1.000000e+00 : f32
      %114 = vector.broadcast %cst_45 : f32 to vector<1x128xf32>
      %115 = arith.addf %114, %113 : vector<1x128xf32>
      %cst_46 = arith.constant 1.000000e+00 : f32
      %116 = vector.broadcast %cst_46 : f32 to vector<1x128xf32>
      %117 = arith.divf %116, %115 : vector<1x128xf32>
      %118 = arith.subf %110, %117 : vector<1x128xf32>
      %119 = math.absf %118 : vector<1x128xf32>
      %120 = vector.broadcast %119 : vector<1x128xf32> to vector<128x128xf32>
      %121 = arith.cmpf ogt, %120, %17 : vector<128x128xf32>
      %cst_47 = arith.constant 1.000000e+00 : f32
      %cst_48 = arith.constant 0.000000e+00 : f32
      %122 = vector.broadcast %cst_47 : f32 to vector<128x128xf32>
      %123 = vector.broadcast %cst_48 : f32 to vector<128x128xf32>
      %124 = arith.select %121, %122, %123 : vector<128x128xi1>, vector<128x128xf32>
      %cst_49 = arith.constant dense<0.000000e+00> : vector<128xf32>
      %125 = vector.multi_reduction <add>, %124, %cst_49 [1] : vector<128x128xf32> to vector<128xf32>
      %126 = vector.shape_cast %125 : vector<128xf32> to vector<128x1xf32>
      %127 = arith.addf %arg8, %126 : vector<128x1xf32>
      %cst_50 = arith.constant 0.000000e+00 : f32
      %128 = vector.shape_cast %110 : vector<1x128xf32> to vector<1x128xf32>
      %129 = vector.broadcast %128 : vector<1x128xf32> to vector<128x128xf32>
      %130 = vector.broadcast %cst_50 : f32 to vector<128x128xf32>
      %131 = arith.select %121, %129, %130 : vector<128x128xi1>, vector<128x128xf32>
      %cst_51 = arith.constant dense<0.000000e+00> : vector<128xf32>
      %132 = vector.multi_reduction <add>, %131, %cst_51 [1] : vector<128x128xf32> to vector<128xf32>
      %133 = vector.shape_cast %132 : vector<128xf32> to vector<128x1xf32>
      %134 = arith.addf %arg9, %133 : vector<128x1xf32>
      %135 = arith.addf %arg10, %110 : vector<1x128xf32>
      scf.yield %127, %134, %135 : vector<128x1xf32>, vector<128x1xf32>, vector<1x128xf32>
    }
    %65 = vector.shape_cast %64#2 : vector<1x128xf32> to vector<1x1x128xf32>
    %cst_27 = arith.constant dense<0.000000e+00> : vector<1xf32>
    %66 = vector.multi_reduction <add>, %65, %cst_27 [1, 2] : vector<1x1x128xf32> to vector<1xf32>
    %67 = vector.shape_cast %66 : vector<1xf32> to vector<1x1x1xf32>
    %68 = vector.extract %67[0, 0, 0] : f32 from vector<1x1x1xf32>
    %69 = arith.subf %64#0, %64#1 : vector<128x1xf32>
    %70 = vector.broadcast %68 : f32 to vector<128x1xf32>
    %71 = arith.subf %70, %64#1 : vector<128x1xf32>
    %72 = vector.broadcast %68 : f32 to vector<128x1xf32>
    %73 = arith.addf %72, %69 : vector<128x1xf32>
    %74 = arith.divf %71, %73 : vector<128x1xf32>
    %cst_28 = arith.constant 1.000000e+00 : f32
    %75 = vector.broadcast %cst_28 : f32 to vector<128x1xf32>
    %76 = arith.subf %75, %74 : vector<128x1xf32>
    %77 = arith.subf %64#1, %6 : vector<128x1xf32>
    %cst_29 = arith.constant 1.000000e+00 : f32
    %78 = vector.broadcast %cst_29 : f32 to vector<128x1xf32>
    %79 = arith.subf %78, %6 : vector<128x1xf32>
    %80 = arith.subf %69, %79 : vector<128x1xf32>
    %81 = vector.broadcast %68 : f32 to vector<128x1xf32>
    %82 = arith.addf %81, %80 : vector<128x1xf32>
    %cst_30 = arith.constant 0.000000e+00 : f32
    %83 = vector.broadcast %cst_30 : f32 to vector<128x1xf32>
    %84 = arith.cmpf ogt, %82, %83 : vector<128x1xf32>
    %85 = vector.broadcast %68 : f32 to vector<128x1xf32>
    %86 = arith.subf %85, %77 : vector<128x1xf32>
    %87 = arith.divf %86, %82 : vector<128x1xf32>
    %cst_31 = arith.constant 1.000000e+00 : f32
    %88 = vector.broadcast %cst_31 : f32 to vector<128x1xf32>
    %89 = arith.subf %88, %87 : vector<128x1xf32>
    %cst_32 = arith.constant 0.000000e+00 : f32
    %90 = vector.broadcast %cst_32 : f32 to vector<128x1xf32>
    %91 = arith.select %84, %89, %90 : vector<128x1xi1>, vector<128x1xf32>
    %92 = arith.subf %76, %91 : vector<128x1xf32>
    %93 = arith.mulf %15, %92 : vector<128x1xf32>
    %94 = vector.shape_cast %93 : vector<128x1xf32> to vector<1x128x1xf32>
    %cst_33 = arith.constant dense<0.000000e+00> : vector<1xf32>
    %95 = vector.multi_reduction <add>, %94, %cst_33 [1, 2] : vector<1x128x1xf32> to vector<1xf32>
    %96 = vector.shape_cast %95 : vector<1xf32> to vector<1x1x1xf32>
    %97 = vector.extract %96[0, 0, 0] : f32 from vector<1x1x1xf32>
    %c0_34 = arith.constant 0 : index
    %c0_35 = arith.constant 0 : index
    %c0_36 = arith.constant 0 : index
    %98 = vector.load %arg6[%c0_34, %c0_35, %c0_36] : memref<1x1x128xf32, #tpu.memory_space<vmem>>, vector<1x1x128xf32>
    %99 = vector.shape_cast %98 : vector<1x1x128xf32> to vector<1x128xf32>
    %100 = vector.broadcast %97 : f32 to vector<1x128xf32>
    %101 = arith.addf %99, %100 : vector<1x128xf32>
    %c0_37 = arith.constant 0 : index
    %c0_38 = arith.constant 0 : index
    %c0_39 = arith.constant 0 : index
    %102 = vector.load %arg6[%c0_37, %c0_38, %c0_39] : memref<1x1x128xf32, #tpu.memory_space<vmem>>, vector<1x1x128xf32>
    %103 = vector.shape_cast %102 : vector<1x1x128xf32> to vector<1x128xf32>
    %104 = vector.shape_cast %101 : vector<1x128xf32> to vector<1x1x128xf32>
    tpu.vector_store %arg6[%c0_37, %c0_38, %c0_39], %104 {strides = array<i32>} : memref<1x1x128xf32, #tpu.memory_space<vmem>>, vector<1x1x128xf32>,
    return
  }
  func.func @transform_0(%arg0: i32, %arg1: i32) -> (i32, i32, i32) {
    %c0_i32 = arith.constant 0 : i32
    %c0_i32_0 = arith.constant 0 : i32
    %c0_i32_1 = arith.constant 0 : i32
    return %arg0, %c0_i32, %c0_i32_0 : i32, i32, i32
  }
  func.func @transform_1(%arg0: i32, %arg1: i32) -> (i32, i32, i32) {
    %c0_i32 = arith.constant 0 : i32
    %c0_i32_0 = arith.constant 0 : i32
    %c0_i32_1 = arith.constant 0 : i32
    return %arg0, %c0_i32, %c0_i32_0 : i32, i32, i32
  }
  func.func @transform_2(%arg0: i32, %arg1: i32) -> (i32, i32, i32, i32) {
    %c0_i32 = arith.constant 0 : i32
    %c0_i32_0 = arith.constant 0 : i32
    %c0_i32_1 = arith.constant 0 : i32
    return %arg0, %arg1, %c0_i32, %c0_i32_0 : i32, i32, i32, i32
  }
  func.func @transform_3(%arg0: i32, %arg1: i32) -> (i32, i32, i32, i32) {
    %c0_i32 = arith.constant 0 : i32
    %c0_i32_0 = arith.constant 0 : i32
    %c0_i32_1 = arith.constant 0 : i32
    return %arg0, %arg1, %c0_i32, %c0_i32_0 : i32, i32, i32, i32
  }
  func.func @transform_4(%arg0: i32, %arg1: i32) -> (i32, i32, i32) {
    %c0_i32 = arith.constant 0 : i32
    %c0_i32_0 = arith.constant 0 : i32
    %c0_i32_1 = arith.constant 0 : i32
    return %arg0, %c0_i32, %c0_i32_0 : i32, i32, i32
  }
}

</mosaic_0001>

<llo_original>
// kernel: tpu_custom_call.1
$region0: #{tpu_custom_call.1}
  #allocation0 [shape = 'u32[]', space=smem, size = 0x4, offset = 0x4, fixed_abs, tag = 'smem constant byte address 0x4 - core index']
  #allocation1 [shape = 'u32[144,128]{1,0:T(1,128)}', space=vmem, size = 0x12000, scoped, tag = 'internal scratch']
  %s0 = inlined_call_operand.vmem [shape: f32[2,2,128], index: 0, kind: input, shape index: {}]
  %s1 = inlined_call_operand.vmem [shape: f32[2,2,128], index: 1, kind: input, shape index: {}]
  %s2 = inlined_call_operand.vmem [shape: f32[2,2,128,1], index: 2, kind: input, shape index: {}]
  %s3 = inlined_call_operand.vmem [shape: f32[2,2,128,1], index: 3, kind: input, shape index: {}]
  %s4 = inlined_call_operand.hbm [shape: f32[2,1,128], index: 4, kind: output, shape index: {}]
  %s5 = sld [smem:[#allocation0]]
  $region67: #{tpu_custom_call.1} parent=0
    _
  %s7 = ssub.s32 1, %s5
  %s8 = scalar_select 0, %s7, %s5
  $region1: #{tpu_custom_call.1} parent=0
    #allocation2 [shape = 'u8[1024]{0}', space=vmem, size = 0x400, scoped, tag = 'output window, operand 0']
    #allocation3 [shape = 's32[2]{0}', space=sflag, size = 0x8, scoped, tag = 'scoped memory for tpu_custom_call.1']
    %9 = vsyncpa [#allocation3], 0
    %s10 = scalar_lea.sflag [#allocation3], 1
    %11 = vsyncpa %s10, 0
    loop: start=0, step=1, limit=6
    $region2: #{tpu_custom_call.1} parent=1 // loop_pre_header
      _
    $region3: #{tpu_custom_call.1} parent=1 // loop_header
      %s13 = sphi 0, %s17
      %p14 = scmp.ge.s32.totalorder %s13, 6
      %s20 = sphi 0, %s32
      %s21 = sphi 0, %s28
      %s22 = sphi 0, %s20
      %s23 = sphi 0, %s21
      %s24 = sphi 0, %s22
      %s25 = sphi 0, %s23
      %s35 = sphi 0, %s37
      %s38 = sphi 0, %s35
      %s39 = sphi 0, %s38
      %s55 = sphi 0, %s39
      %s61 = sphi 0, %s63
      %s64 = sphi 0, %s61
      %s65 = sphi 0, %s64
      %s81 = sphi 0, %s65
      %s89 = sphi 0, %s91
      %s92 = sphi 0, %s89
      %s93 = sphi 0, %s92
      %s109 = sphi 0, %s93
      %s117 = sphi 0, %s119
      %s120 = sphi 0, %s117
      %s121 = sphi 0, %s120
      %s137 = sphi 0, %s121
      %s143 = sphi 0, %s145
      %s146 = sphi 0, %s143
      %s147 = sphi 0, %s146
      %s163 = sphi 0, %s147
    $region4: #{tpu_custom_call.1} parent=1 // loop_header_branch
      %16 = sbr.rel (%p14) target = $region8
    $region5: #{tpu_custom_call.1} parent=1 // loop_body
      %s18 = ssub.s32 %s13, 1
      %s19 = ssub.s32 %s13, 2
      %s26 = sadd.s32 1, %s21
      %p27 = scmp.ge.s32.totalorder %s26, 2
      %s28 = scalar_select %p27, 0, %s26
      %s29 = sadd.s32 1, %s20
      %s30 = scalar_select %p27, %s29, %s20
      %p31 = scmp.ge.s32.totalorder %s30, 2
      %s32 = scalar_select %p31, 0, %s30
      %s33 = ssub.s32 %s20, %s32
      %p34 = scmp.eq.s32.totalorder %s33, 0
      %s36 = sadd.s32 %s35, 1
      %s37 = scalar_select %p34, %s35, %s36
      %p40 = pneg %p34
      %p41 = scmp.eq.s32.totalorder %s13, 3
      %p42 = por %p40, %p41
      %p43 = scmp.ne.s32.totalorder %s35, %s38
      %p44 = scmp.eq.s32.totalorder %s13, 0
      %p45 = por %p43, %p44
      %p46 = scmp.ne.s32.totalorder %s35, %s38
      %p47 = scmp.eq.s32.totalorder %s18, 3
      %p48 = por %p46, %p47
      %p49 = scmp.ne.s32.totalorder %s38, %s39
      %p50 = scmp.eq.s32.totalorder %s18, 0
      %p51 = por %p49, %p50
      %p52 = scmp.ne.s32.totalorder %s38, %s39
      %p53 = scmp.eq.s32.totalorder %s19, 3
      %p54 = por %p52, %p53
      %p56 = scmp.ne.s32.totalorder %s39, %s55
      %p57 = scmp.eq.s32.totalorder %s19, 0
      %p58 = por %p56, %p57
      %s59 = ssub.s32 %s20, %s32
      %p60 = scmp.eq.s32.totalorder %s59, 0
      %s62 = sadd.s32 %s61, 1
      %s63 = scalar_select %p60, %s61, %s62
      %p66 = pneg %p60
      %p67 = scmp.eq.s32.totalorder %s13, 3
      %p68 = por %p66, %p67
      %p69 = scmp.ne.s32.totalorder %s61, %s64
      %p70 = scmp.eq.s32.totalorder %s13, 0
      %p71 = por %p69, %p70
      %p72 = scmp.ne.s32.totalorder %s61, %s64
      %p73 = scmp.eq.s32.totalorder %s18, 3
      %p74 = por %p72, %p73
      %p75 = scmp.ne.s32.totalorder %s64, %s65
      %p76 = scmp.eq.s32.totalorder %s18, 0
      %p77 = por %p75, %p76
      %p78 = scmp.ne.s32.totalorder %s64, %s65
      %p79 = scmp.eq.s32.totalorder %s19, 3
      %p80 = por %p78, %p79
      %p82 = scmp.ne.s32.totalorder %s65, %s81
      %p83 = scmp.eq.s32.totalorder %s19, 0
      %p84 = por %p82, %p83
      %s85 = ssub.s32 %s20, %s32
      %s86 = ssub.s32 %s21, %s28
      %s87 = sor.u32 %s85, %s86
      %p88 = scmp.eq.s32.totalorder %s87, 0
      %s90 = sadd.s32 %s89, 1
      %s91 = scalar_select %p88, %s89, %s90
      %p94 = pneg %p88
      %p95 = scmp.eq.s32.totalorder %s13, 3
      %p96 = por %p94, %p95
      %p97 = scmp.ne.s32.totalorder %s89, %s92
      %p98 = scmp.eq.s32.totalorder %s13, 0
      %p99 = por %p97, %p98
      %p100 = scmp.ne.s32.totalorder %s89, %s92
      %p101 = scmp.eq.s32.totalorder %s18, 3
      %p102 = por %p100, %p101
      %p103 = scmp.ne.s32.totalorder %s92, %s93
      %p104 = scmp.eq.s32.totalorder %s18, 0
      %p105 = por %p103, %p104
      %p106 = scmp.ne.s32.totalorder %s92, %s93
      %p107 = scmp.eq.s32.totalorder %s19, 3
      %p108 = por %p106, %p107
      %p110 = scmp.ne.s32.totalorder %s93, %s109
      %p111 = scmp.eq.s32.totalorder %s19, 0
      %p112 = por %p110, %p111
      %s113 = ssub.s32 %s20, %s32
      %s114 = ssub.s32 %s21, %s28
      %s115 = sor.u32 %s113, %s114
      %p116 = scmp.eq.s32.totalorder %s115, 0
      %s118 = sadd.s32 %s117, 1
      %s119 = scalar_select %p116, %s117, %s118
      %p122 = pneg %p116
      %p123 = scmp.eq.s32.totalorder %s13, 3
      %p124 = por %p122, %p123
      %p125 = scmp.ne.s32.totalorder %s117, %s120
      %p126 = scmp.eq.s32.totalorder %s13, 0
      %p127 = por %p125, %p126
      %p128 = scmp.ne.s32.totalorder %s117, %s120
      %p129 = scmp.eq.s32.totalorder %s18, 3
      %p130 = por %p128, %p129
      %p131 = scmp.ne.s32.totalorder %s120, %s121
      %p132 = scmp.eq.s32.totalorder %s18, 0
      %p133 = por %p131, %p132
      %p134 = scmp.ne.s32.totalorder %s120, %s121
      %p135 = scmp.eq.s32.totalorder %s19, 3
      %p136 = por %p134, %p135
      %p138 = scmp.ne.s32.totalorder %s121, %s137
      %p139 = scmp.eq.s32.totalorder %s19, 0
      %p140 = por %p138, %p139
      %s141 = ssub.s32 %s20, %s32
      %p142 = scmp.eq.s32.totalorder %s141, 0
      %s144 = sadd.s32 %s143, 1
      %s145 = scalar_select %p142, %s143, %s144
      %p148 = pneg %p142
      %p149 = scmp.eq.s32.totalorder %s13, 3
      %p150 = por %p148, %p149
      %p151 = scmp.ne.s32.totalorder %s143, %s146
      %p152 = scmp.eq.s32.totalorder %s13, 0
      %p153 = por %p151, %p152
      %p154 = scmp.ne.s32.totalorder %s143, %s146
      %p155 = scmp.eq.s32.totalorder %s18, 3
      %p156 = por %p154, %p155
      %p157 = scmp.ne.s32.totalorder %s146, %s147
      %p158 = scmp.eq.s32.totalorder %s18, 0
      %p159 = por %p157, %p158
      %p160 = scmp.ne.s32.totalorder %s146, %s147
      %p161 = scmp.eq.s32.totalorder %s19, 3
      %p162 = por %p160, %p161
      %p164 = scmp.ne.s32.totalorder %s147, %s163
      %p165 = scmp.eq.s32.totalorder %s19, 0
      %p166 = por %p164, %p165
      %p167 = scmp.le.s32.totalorder 1, %s13
      %p168 = scmp.lt.s32.totalorder %s13, 5
      %p169 = pnand %p167, %p168
      %p170 = pneg %p169
      // Predicated region
      $region9: #{tpu_custom_call.1} parent=5 // pred_check
        _
      $region10: #{tpu_custom_call.1} parent=5 // pred_check_branch
        %172 = sbr.rel (%p169) target = $region12
      $region11: #{tpu_custom_call.1} parent=5 // pred_region
        %s173 = ssub.s32 %s13, 1
      $region12: #{tpu_custom_call.1} parent=5 // pred_fallthru
        _
      %p174 = scmp.lt.s32.totalorder %s13, 4
      // Predicated region
      $region13: #{tpu_custom_call.1} parent=5 // pred_check
        %p175 = pneg %p174
      $region14: #{tpu_custom_call.1} parent=5 // pred_check_branch
        %177 = sbr.rel (%p175) target = $region16
      $region15: #{tpu_custom_call.1} parent=5 // pred_region
        // Predicated region
        $region17: #{tpu_custom_call.1} parent=15 // pred_check
          %p178 = pneg %p45
        $region18: #{tpu_custom_call.1} parent=15 // pred_check_branch
          %180 = sbr.rel (%p178) target = $region20
        $region19: #{tpu_custom_call.1} parent=15 // pred_region
          %p181 = scmp.lt.s32.totalorder %s20, 1
          %s182 = scalar_select %p181, %s20, 1
          %s183 = smul.addr %s182, 2
          %s184 = scalar_lea.vmem %s0, %s183
        $region20: #{tpu_custom_call.1} parent=15 // pred_fallthru
          _
        // Predicated region
        $region21: #{tpu_custom_call.1} parent=15 // pred_check
          %p185 = pneg %p71
        $region22: #{tpu_custom_call.1} parent=15 // pred_check_branch
          %187 = sbr.rel (%p185) target = $region24
        $region23: #{tpu_custom_call.1} parent=15 // pred_region
          %p188 = scmp.lt.s32.totalorder %s20, 1
          %s189 = scalar_select %p188, %s20, 1
          %s190 = smul.addr %s189, 2
          %s191 = scalar_lea.vmem %s1, %s190
        $region24: #{tpu_custom_call.1} parent=15 // pred_fallthru
          _
        // Predicated region
        $region25: #{tpu_custom_call.1} parent=15 // pred_check
          %p192 = pneg %p99
        $region26: #{tpu_custom_call.1} parent=15 // pred_check_branch
          %194 = sbr.rel (%p192) target = $region28
        $region27: #{tpu_custom_call.1} parent=15 // pred_region
          %p195 = scmp.lt.s32.totalorder %s20, 1
          %s196 = scalar_select %p195, %s20, 1
          %p197 = scmp.lt.s32.totalorder %s21, 1
          %s198 = scalar_select %p197, %s21, 1
          %s199 = smul.addr %s198, 16
          %s200 = smul.addr %s196, 32
          %s201 = sadd.s32 %s199, %s200
          %s202 = smul.addr %s201, 8
          %s203 = scalar_lea.vmem %s2, %s202
        $region28: #{tpu_custom_call.1} parent=15 // pred_fallthru
          _
        // Predicated region
        $region29: #{tpu_custom_call.1} parent=15 // pred_check
          %p204 = pneg %p127
        $region30: #{tpu_custom_call.1} parent=15 // pred_check_branch
          %206 = sbr.rel (%p204) target = $region32
        $region31: #{tpu_custom_call.1} parent=15 // pred_region
          %p207 = scmp.lt.s32.totalorder %s20, 1
          %s208 = scalar_select %p207, %s20, 1
          %p209 = scmp.lt.s32.totalorder %s21, 1
          %s210 = scalar_select %p209, %s21, 1
          %s211 = smul.addr %s210, 16
          %s212 = smul.addr %s208, 32
          %s213 = sadd.s32 %s211, %s212
          %s214 = smul.addr %s213, 8
          %s215 = scalar_lea.vmem %s3, %s214
        $region32: #{tpu_custom_call.1} parent=15 // pred_fallthru
          _
      $region16: #{tpu_custom_call.1} parent=5 // pred_fallthru
        _
      %p216 = scmp.le.s32.totalorder 1, %s13
      %p217 = scmp.lt.s32.totalorder %s13, 5
      %p218 = pnand %p216, %p217
      %p219 = pneg %p218
      // Predicated region
      $region33: #{tpu_custom_call.1} parent=5 // pred_check
        _
      $region34: #{tpu_custom_call.1} parent=5 // pred_check_branch
        %221 = sbr.rel (%p218) target = $region36
      $region35: #{tpu_custom_call.1} parent=5 // pred_region
        %s222 = ssub.s32 %s13, 1
        %p223 = scmp.lt.s32.totalorder %s22, 1
        %s224 = scalar_select %p223, %s22, 1
        %s225 = smul.addr %s224, 2
        %s226 = scalar_lea.vmem %s0, %s225
        %p227 = pneg %p51
        %p228 = pneg %p48
        %p229 = scmp.lt.s32.totalorder %s22, 1
        %s230 = scalar_select %p229, %s22, 1
        %s231 = smul.addr %s230, 2
        %s232 = scalar_lea.vmem %s1, %s231
        %p233 = pneg %p77
        %p234 = pneg %p74
        %p235 = scmp.lt.s32.totalorder %s22, 1
        %s236 = scalar_select %p235, %s22, 1
        %p237 = scmp.lt.s32.totalorder %s23, 1
        %s238 = scalar_select %p237, %s23, 1
        %s239 = smul.addr %s238, 16
        %s240 = smul.addr %s236, 32
        %s241 = sadd.s32 %s239, %s240
        %s242 = smul.addr %s241, 8
        %s243 = scalar_lea.vmem %s2, %s242
        %p244 = pneg %p105
        %p245 = pneg %p102
        %p246 = scmp.lt.s32.totalorder %s22, 1
        %s247 = scalar_select %p246, %s22, 1
        %p248 = scmp.lt.s32.totalorder %s23, 1
        %s249 = scalar_select %p248, %s23, 1
        %s250 = smul.addr %s249, 16
        %s251 = smul.addr %s247, 32
        %s252 = sadd.s32 %s250, %s251
        %s253 = smul.addr %s252, 8
        %s254 = scalar_lea.vmem %s3, %s253
        %p255 = pneg %p133
        %p256 = pneg %p130
        %p257 = pneg %p159
        %p258 = pneg %p156
        %s259 = sand.u32 %s146, 1
        %s260 = scalar_lea.sflag [#allocation3], %s259
        %s261 = sand.u32 %s146, 1
        %s262 = scalar_lea.vmem [#allocation2], %s261
        %p263 = scmp.lt.s32.totalorder %s22, 1
        %s264 = scalar_select %p263, %s22, 1
        %s265 = smul.addr %s264, 2
        %s266 = scalar_lea.vmem %s0, %s265
        %p267 = scmp.lt.s32.totalorder %s22, 1
        %s268 = scalar_select %p267, %s22, 1
        %s269 = smul.addr %s268, 2
        %s270 = scalar_lea.vmem %s1, %s269
        %p271 = scmp.lt.s32.totalorder %s22, 1
        %s272 = scalar_select %p271, %s22, 1
        %p273 = scmp.lt.s32.totalorder %s23, 1
        %s274 = scalar_select %p273, %s23, 1
        %s275 = smul.addr %s274, 16
        %s276 = smul.addr %s272, 32
        %s277 = sadd.s32 %s275, %s276
        %s278 = smul.addr %s277, 8
        %s279 = scalar_lea.vmem %s2, %s278
        %p280 = scmp.lt.s32.totalorder %s22, 1
        %s281 = scalar_select %p280, %s22, 1
        %p282 = scmp.lt.s32.totalorder %s23, 1
        %s283 = scalar_select %p282, %s23, 1
        %s284 = smul.addr %s283, 16
        %s285 = smul.addr %s281, 32
        %s286 = sadd.s32 %s284, %s285
        %s287 = smul.addr %s286, 8
        %s288 = scalar_lea.vmem %s3, %s287
        %p289 = scmp.eq.s32.totalorder %s23, 0
        // Predicated region
        $region37: #{tpu_custom_call.1} parent=35 // pred_check
          %p290 = pneg %p289
        $region38: #{tpu_custom_call.1} parent=35 // pred_check_branch
          %292 = sbr.rel (%p290) target = $region40
        $region39: #{tpu_custom_call.1} parent=35 // pred_region
          %293 = vst [vmem:[%s262] sm:$0x1] 0.0
        $region40: #{tpu_custom_call.1} parent=35 // pred_fallthru
          _
        %v294 = vld [vmem:[%s279] sm:$0xff]
        %v295 = vld [vmem:[%s279 + $0x8] sm:$0xff]
        %v296 = vld [vmem:[%s279 + $0x10] sm:$0xff]
        %v297 = vld [vmem:[%s279 + $0x18] sm:$0xff]
        %v298 = vld [vmem:[%s279 + $0x20] sm:$0xff]
        %v299 = vld [vmem:[%s279 + $0x28] sm:$0xff]
        %v300 = vld [vmem:[%s279 + $0x30] sm:$0xff]
        %v301 = vld [vmem:[%s279 + $0x38] sm:$0xff]
        %v302 = vld [vmem:[%s279 + $0x40] sm:$0xff]
        %v303 = vld [vmem:[%s279 + $0x48] sm:$0xff]
        %v304 = vld [vmem:[%s279 + $0x50] sm:$0xff]
        %v305 = vld [vmem:[%s279 + $0x58] sm:$0xff]
        %v306 = vld [vmem:[%s279 + $0x60] sm:$0xff]
        %v307 = vld [vmem:[%s279 + $0x68] sm:$0xff]
        %v308 = vld [vmem:[%s279 + $0x70] sm:$0xff]
        %v309 = vld [vmem:[%s279 + $0x78] sm:$0xff]
        %v310 = vld [vmem:[%s288] sm:$0xff]
        %v311 = vld [vmem:[%s288 + $0x8] sm:$0xff]
        %v312 = vld [vmem:[%s288 + $0x10] sm:$0xff]
        %v313 = vld [vmem:[%s288 + $0x18] sm:$0xff]
        %v314 = vld [vmem:[%s288 + $0x20] sm:$0xff]
        %v315 = vld [vmem:[%s288 + $0x28] sm:$0xff]
        %v316 = vld [vmem:[%s288 + $0x30] sm:$0xff]
        %v317 = vld [vmem:[%s288 + $0x38] sm:$0xff]
        %v318 = vld [vmem:[%s288 + $0x40] sm:$0xff]
        %v319 = vld [vmem:[%s288 + $0x48] sm:$0xff]
        %v320 = vld [vmem:[%s288 + $0x50] sm:$0xff]
        %v321 = vld [vmem:[%s288 + $0x58] sm:$0xff]
        %v322 = vld [vmem:[%s288 + $0x60] sm:$0xff]
        %v323 = vld [vmem:[%s288 + $0x68] sm:$0xff]
        %v324 = vld [vmem:[%s288 + $0x70] sm:$0xff]
        %v325 = vld [vmem:[%s288 + $0x78] sm:$0xff]
        %v326 = vsub.f32 0.0, %v294
        %v327 = vsub.f32 0.0, %v295
        %v328 = vsub.f32 0.0, %v296
        %v329 = vsub.f32 0.0, %v297
        %v330 = vsub.f32 0.0, %v298
        %v331 = vsub.f32 0.0, %v299
        %v332 = vsub.f32 0.0, %v300
        %v333 = vsub.f32 0.0, %v301
        %v334 = vsub.f32 0.0, %v302
        %v335 = vsub.f32 0.0, %v303
        %v336 = vsub.f32 0.0, %v304
        %v337 = vsub.f32 0.0, %v305
        %v338 = vsub.f32 0.0, %v306
        %v339 = vsub.f32 0.0, %v307
        %v340 = vsub.f32 0.0, %v308
        %v341 = vsub.f32 0.0, %v309
        %v342 = vmul.f32 %v326, 1.442695
        %v343 = vpow.pop %v342
        %v344 = vmul.f32 %v327, 1.442695
        %v345 = vpow.pop %v344
        %v346 = vmul.f32 %v328, 1.442695
        %v347 = vpow.pop %v346
        %v348 = vmul.f32 %v329, 1.442695
        %v349 = vpow.pop %v348
        %v350 = vmul.f32 %v330, 1.442695
        %v351 = vpow.pop %v350
        %v352 = vmul.f32 %v331, 1.442695
        %v353 = vpow.pop %v352
        %v354 = vmul.f32 %v332, 1.442695
        %v355 = vpow.pop %v354
        %v356 = vmul.f32 %v333, 1.442695
        %v357 = vpow.pop %v356
        %v358 = vmul.f32 %v334, 1.442695
        %v359 = vpow.pop %v358
        %v360 = vmul.f32 %v335, 1.442695
        %v361 = vpow.pop %v360
        %v362 = vmul.f32 %v336, 1.442695
        %v363 = vpow.pop %v362
        %v364 = vmul.f32 %v337, 1.442695
        %v365 = vpow.pop %v364
        %v366 = vmul.f32 %v338, 1.442695
        %v367 = vpow.pop %v366
        %v368 = vmul.f32 %v339, 1.442695
        %v369 = vpow.pop %v368
        %v370 = vmul.f32 %v340, 1.442695
        %v371 = vpow.pop %v370
        %v372 = vmul.f32 %v341, 1.442695
        %v373 = vpow.pop %v372
        %v374 = vadd.f32 %v343, 1.0
        %v375 = vadd.f32 %v345, 1.0
        %v376 = vadd.f32 %v347, 1.0
        %v377 = vadd.f32 %v349, 1.0
        %v378 = vadd.f32 %v351, 1.0
        %v379 = vadd.f32 %v353, 1.0
        %v380 = vadd.f32 %v355, 1.0
        %v381 = vadd.f32 %v357, 1.0
        %v382 = vadd.f32 %v359, 1.0
        %v383 = vadd.f32 %v361, 1.0
        %v384 = vadd.f32 %v363, 1.0
        %v385 = vadd.f32 %v365, 1.0
        %v386 = vadd.f32 %v367, 1.0
        %v387 = vadd.f32 %v369, 1.0
        %v388 = vadd.f32 %v371, 1.0
        %v389 = vadd.f32 %v373, 1.0
        %v390 = vrcp.pop %v374
        %v391 = vmul.f32 1.0, %v390
        %v392 = vrcp.pop %v375
        %v393 = vmul.f32 1.0, %v392
        %v394 = vrcp.pop %v376
        %v395 = vmul.f32 1.0, %v394
        %v396 = vrcp.pop %v377
        %v397 = vmul.f32 1.0, %v396
        %v398 = vrcp.pop %v378
        %v399 = vmul.f32 1.0, %v398
        %v400 = vrcp.pop %v379
        %v401 = vmul.f32 1.0, %v400
        %v402 = vrcp.pop %v380
        %v403 = vmul.f32 1.0, %v402
        %v404 = vrcp.pop %v381
        %v405 = vmul.f32 1.0, %v404
        %v406 = vrcp.pop %v382
        %v407 = vmul.f32 1.0, %v406
        %v408 = vrcp.pop %v383
        %v409 = vmul.f32 1.0, %v408
        %v410 = vrcp.pop %v384
        %v411 = vmul.f32 1.0, %v410
        %v412 = vrcp.pop %v385
        %v413 = vmul.f32 1.0, %v412
        %v414 = vrcp.pop %v386
        %v415 = vmul.f32 1.0, %v414
        %v416 = vrcp.pop %v387
        %v417 = vmul.f32 1.0, %v416
        %v418 = vrcp.pop %v388
        %v419 = vmul.f32 1.0, %v418
        %v420 = vrcp.pop %v389
        %v421 = vmul.f32 1.0, %v420
        %v422 = vsub.f32 %v310, %v391
        %v423 = vsub.f32 %v311, %v393
        %v424 = vsub.f32 %v312, %v395
        %v425 = vsub.f32 %v313, %v397
        %v426 = vsub.f32 %v314, %v399
        %v427 = vsub.f32 %v315, %v401
        %v428 = vsub.f32 %v316, %v403
        %v429 = vsub.f32 %v317, %v405
        %v430 = vsub.f32 %v318, %v407
        %v431 = vsub.f32 %v319, %v409
        %v432 = vsub.f32 %v320, %v411
        %v433 = vsub.f32 %v321, %v413
        %v434 = vsub.f32 %v322, %v415
        %v435 = vsub.f32 %v323, %v417
        %v436 = vsub.f32 %v324, %v419
        %v437 = vsub.f32 %v325, %v421
        %v438 = vand.u32 2147483647, %v422
        %v439 = vand.u32 2147483647, %v423
        %v440 = vand.u32 2147483647, %v424
        %v441 = vand.u32 2147483647, %v425
        %v442 = vand.u32 2147483647, %v426
        %v443 = vand.u32 2147483647, %v427
        %v444 = vand.u32 2147483647, %v428
        %v445 = vand.u32 2147483647, %v429
        %v446 = vand.u32 2147483647, %v430
        %v447 = vand.u32 2147483647, %v431
        %v448 = vand.u32 2147483647, %v432
        %v449 = vand.u32 2147483647, %v433
        %v450 = vand.u32 2147483647, %v434
        %v451 = vand.u32 2147483647, %v435
        %v452 = vand.u32 2147483647, %v436
        %v453 = vand.u32 2147483647, %v437
        %455 = vset.pattern.permute.xlu0 0
        %456 = vperm.xlu0 %455, %v438
        %v457 = vpop.permute.xlu0 %456
        %460 = vset.pattern.permute.xlu0 0
        %461 = vperm.xlu0 %460, %v439
        %v462 = vpop.permute.xlu0 %461
        %465 = vset.pattern.permute.xlu0 0
        %466 = vperm.xlu0 %465, %v440
        %v467 = vpop.permute.xlu0 %466
        %470 = vset.pattern.permute.xlu0 0
        %471 = vperm.xlu0 %470, %v441
        %v472 = vpop.permute.xlu0 %471
        %475 = vset.pattern.permute.xlu0 0
        %476 = vperm.xlu0 %475, %v442
        %v477 = vpop.permute.xlu0 %476
        %480 = vset.pattern.permute.xlu0 0
        %481 = vperm.xlu0 %480, %v443
        %v482 = vpop.permute.xlu0 %481
        %485 = vset.pattern.permute.xlu0 0
        %486 = vperm.xlu0 %485, %v444
        %v487 = vpop.permute.xlu0 %486
        %490 = vset.pattern.permute.xlu0 0
        %491 = vperm.xlu0 %490, %v445
        %v492 = vpop.permute.xlu0 %491
        %495 = vset.pattern.permute.xlu0 0
        %496 = vperm.xlu0 %495, %v446
        %v497 = vpop.permute.xlu0 %496
        %500 = vset.pattern.permute.xlu0 0
        %501 = vperm.xlu0 %500, %v447
        %v502 = vpop.permute.xlu0 %501
        %505 = vset.pattern.permute.xlu0 0
        %506 = vperm.xlu0 %505, %v448
        %v507 = vpop.permute.xlu0 %506
        %510 = vset.pattern.permute.xlu0 0
        %511 = vperm.xlu0 %510, %v449
        %v512 = vpop.permute.xlu0 %511
        %515 = vset.pattern.permute.xlu0 0
        %516 = vperm.xlu0 %515, %v450
        %v517 = vpop.permute.xlu0 %516
        %520 = vset.pattern.permute.xlu0 0
        %521 = vperm.xlu0 %520, %v451
        %v522 = vpop.permute.xlu0 %521
        %525 = vset.pattern.permute.xlu0 0
        %526 = vperm.xlu0 %525, %v452
        %v527 = vpop.permute.xlu0 %526
        %530 = vset.pattern.permute.xlu0 0
        %531 = vperm.xlu0 %530, %v453
        %v532 = vpop.permute.xlu0 %531
        %v534 = vlaneseq
        %v535 = vshrl.u32 %v534, 7
        %v536 = vadd.s32 %v535, 8
        %v537 = vadd.s32 %v535, 16
        %v538 = vadd.s32 %v535, 24
        %v539 = vadd.s32 %v535, 32
        %v540 = vadd.s32 %v535, 40
        %v541 = vadd.s32 %v535, 48
        %v542 = vadd.s32 %v535, 56
        %v543 = vadd.s32 %v535, 64
        %v544 = vadd.s32 %v535, 72
        %v545 = vadd.s32 %v535, 80
        %v546 = vadd.s32 %v535, 88
        %v547 = vadd.s32 %v535, 96
        %v548 = vadd.s32 %v535, 104
        %v549 = vadd.s32 %v535, 112
        %v550 = vadd.s32 %v535, 120
        %v551 = vlaneseq
        %v552 = vand.u32 %v551, 127
        %vm553 = vcmp.le.s32.totalorder %v552, %v535
        %vm554 = vcmp.le.s32.totalorder %v552, %v536
        %vm555 = vcmp.le.s32.totalorder %v552, %v537
        %vm556 = vcmp.le.s32.totalorder %v552, %v538
        %vm557 = vcmp.le.s32.totalorder %v552, %v539
        %vm558 = vcmp.le.s32.totalorder %v552, %v540
        %vm559 = vcmp.le.s32.totalorder %v552, %v541
        %vm560 = vcmp.le.s32.totalorder %v552, %v542
        %vm561 = vcmp.le.s32.totalorder %v552, %v543
        %vm562 = vcmp.le.s32.totalorder %v552, %v544
        %vm563 = vcmp.le.s32.totalorder %v552, %v545
        %vm564 = vcmp.le.s32.totalorder %v552, %v546
        %vm565 = vcmp.le.s32.totalorder %v552, %v547
        %vm566 = vcmp.le.s32.totalorder %v552, %v548
        %vm567 = vcmp.le.s32.totalorder %v552, %v549
        %vm568 = vcmp.le.s32.totalorder %v552, %v550
        // While loop
        $region41: #{tpu_custom_call.1} parent=35 // loop_pre_header
          _
        $region42: #{tpu_custom_call.1} parent=35 // loop_header
          %s570 = sphi 0, %s572
          %p571 = scmp.ge.s32.totalorder %s570, %s23
          %v575 = vphi 0.0, %v688
          %v576 = vphi 0.0, %v689
          %v577 = vphi 0.0, %v690
          %v578 = vphi 0.0, %v691
          %v579 = vphi 0.0, %v692
          %v580 = vphi 0.0, %v693
          %v581 = vphi 0.0, %v694
          %v582 = vphi 0.0, %v695
          %v583 = vphi 0.0, %v696
          %v584 = vphi 0.0, %v697
          %v585 = vphi 0.0, %v698
          %v586 = vphi 0.0, %v699
          %v587 = vphi 0.0, %v700
          %v588 = vphi 0.0, %v701
          %v589 = vphi 0.0, %v702
          %v590 = vphi 0.0, %v703
          %v591 = vphi 0.0, %v756
          %v592 = vphi 0.0, %v757
          %v593 = vphi 0.0, %v758
          %v594 = vphi 0.0, %v759
          %v595 = vphi 0.0, %v760
          %v596 = vphi 0.0, %v761
          %v597 = vphi 0.0, %v762
          %v598 = vphi 0.0, %v763
          %v599 = vphi 0.0, %v764
          %v600 = vphi 0.0, %v765
          %v601 = vphi 0.0, %v766
          %v602 = vphi 0.0, %v767
          %v603 = vphi 0.0, %v768
          %v604 = vphi 0.0, %v769
          %v605 = vphi 0.0, %v770
          %v606 = vphi 0.0, %v771
          %v607 = vphi 0.0, %v772
        $region43: #{tpu_custom_call.1} parent=35 // loop_header_branch
          %574 = sbr.rel (%p571) target = $region47
        $region44: #{tpu_custom_call.1} parent=35 // loop_body
          %s608 = scalar_lea.vmem %s266, %s570
          %v609 = vld [vmem:[%s608] sm:$0x1]
          %s610 = scalar_lea.vmem %s270, %s570
          %v611 = vld [vmem:[%s610] sm:$0x1]
          %v612 = vsub.f32 0.0, %v609
          %v613 = vmul.f32 %v612, 1.442695
          %v614 = vpow.pop %v613
          %v615 = vadd.f32 %v614, 1.0
          %v616 = vrcp.pop %v615
          %v617 = vmul.f32 1.0, %v616
          %v618 = vsub.f32 %v611, %v617
          %v619 = vand.u32 2147483647, %v618
          %v620 = vlaneseq
          %v621 = vshrl.u32 %v620, 7
          %v622 = vsub.s32 0, %v621
          %v623 = vrot.slane %v619, %v622
          %vm624 = vcmp.ge.f32.partialorder %v623, %v457
          %vm625 = vcmp.ge.f32.partialorder %v623, %v462
          %vm626 = vcmp.ge.f32.partialorder %v623, %v467
          %vm627 = vcmp.ge.f32.partialorder %v623, %v472
          %vm628 = vcmp.ge.f32.partialorder %v623, %v477
          %vm629 = vcmp.ge.f32.partialorder %v623, %v482
          %vm630 = vcmp.ge.f32.partialorder %v623, %v487
          %vm631 = vcmp.ge.f32.partialorder %v623, %v492
          %vm632 = vcmp.ge.f32.partialorder %v623, %v497
          %vm633 = vcmp.ge.f32.partialorder %v623, %v502
          %vm634 = vcmp.ge.f32.partialorder %v623, %v507
          %vm635 = vcmp.ge.f32.partialorder %v623, %v512
          %vm636 = vcmp.ge.f32.partialorder %v623, %v517
          %vm637 = vcmp.ge.f32.partialorder %v623, %v522
          %vm638 = vcmp.ge.f32.partialorder %v623, %v527
          %vm639 = vcmp.ge.f32.partialorder %v623, %v532
          %v640 = vsel %vm624, 1.0, 0.0
          %v641 = vsel %vm625, 1.0, 0.0
          %v642 = vsel %vm626, 1.0, 0.0
          %v643 = vsel %vm627, 1.0, 0.0
          %v644 = vsel %vm628, 1.0, 0.0
          %v645 = vsel %vm629, 1.0, 0.0
          %v646 = vsel %vm630, 1.0, 0.0
          %v647 = vsel %vm631, 1.0, 0.0
          %v648 = vsel %vm632, 1.0, 0.0
          %v649 = vsel %vm633, 1.0, 0.0
          %v650 = vsel %vm634, 1.0, 0.0
          %v651 = vsel %vm635, 1.0, 0.0
          %v652 = vsel %vm636, 1.0, 0.0
          %v653 = vsel %vm637, 1.0, 0.0
          %v654 = vsel %vm638, 1.0, 0.0
          %v655 = vsel %vm639, 1.0, 0.0
          %656 = vadd.xlane.f32.xlu0 %v640
          %v657 = vpop.xlane.xlu0 %656
          %658 = vadd.xlane.f32.xlu0 %v641
          %v659 = vpop.xlane.xlu0 %658
          %660 = vadd.xlane.f32.xlu0 %v642
          %v661 = vpop.xlane.xlu0 %660
          %662 = vadd.xlane.f32.xlu0 %v643
          %v663 = vpop.xlane.xlu0 %662
          %664 = vadd.xlane.f32.xlu0 %v644
          %v665 = vpop.xlane.xlu0 %664
          %666 = vadd.xlane.f32.xlu0 %v645
          %v667 = vpop.xlane.xlu0 %666
          %668 = vadd.xlane.f32.xlu0 %v646
          %v669 = vpop.xlane.xlu0 %668
          %670 = vadd.xlane.f32.xlu0 %v647
          %v671 = vpop.xlane.xlu0 %670
          %672 = vadd.xlane.f32.xlu0 %v648
          %v673 = vpop.xlane.xlu0 %672
          %674 = vadd.xlane.f32.xlu0 %v649
          %v675 = vpop.xlane.xlu0 %674
          %676 = vadd.xlane.f32.xlu0 %v650
          %v677 = vpop.xlane.xlu0 %676
          %678 = vadd.xlane.f32.xlu0 %v651
          %v679 = vpop.xlane.xlu0 %678
          %680 = vadd.xlane.f32.xlu0 %v652
          %v681 = vpop.xlane.xlu0 %680
          %682 = vadd.xlane.f32.xlu0 %v653
          %v683 = vpop.xlane.xlu0 %682
          %684 = vadd.xlane.f32.xlu0 %v654
          %v685 = vpop.xlane.xlu0 %684
          %686 = vadd.xlane.f32.xlu0 %v655
          %v687 = vpop.xlane.xlu0 %686
          %v688 = vadd.f32 %v575, %v657
          %v689 = vadd.f32 %v576, %v659
          %v690 = vadd.f32 %v577, %v661
          %v691 = vadd.f32 %v578, %v663
          %v692 = vadd.f32 %v579, %v665
          %v693 = vadd.f32 %v580, %v667
          %v694 = vadd.f32 %v581, %v669
          %v695 = vadd.f32 %v582, %v671
          %v696 = vadd.f32 %v583, %v673
          %v697 = vadd.f32 %v584, %v675
          %v698 = vadd.f32 %v585, %v677
          %v699 = vadd.f32 %v586, %v679
          %v700 = vadd.f32 %v587, %v681
          %v701 = vadd.f32 %v588, %v683
          %v702 = vadd.f32 %v589, %v685
          %v703 = vadd.f32 %v590, %v687
          %v704 = vlaneseq
          %v705 = vshrl.u32 %v704, 7
          %v706 = vsub.s32 0, %v705
          %v707 = vrot.slane %v611, %v706
          %v708 = vsel %vm624, %v707, 0.0
          %v709 = vsel %vm625, %v707, 0.0
          %v710 = vsel %vm626, %v707, 0.0
          %v711 = vsel %vm627, %v707, 0.0
          %v712 = vsel %vm628, %v707, 0.0
          %v713 = vsel %vm629, %v707, 0.0
          %v714 = vsel %vm630, %v707, 0.0
          %v715 = vsel %vm631, %v707, 0.0
          %v716 = vsel %vm632, %v707, 0.0
          %v717 = vsel %vm633, %v707, 0.0
          %v718 = vsel %vm634, %v707, 0.0
          %v719 = vsel %vm635, %v707, 0.0
          %v720 = vsel %vm636, %v707, 0.0
          %v721 = vsel %vm637, %v707, 0.0
          %v722 = vsel %vm638, %v707, 0.0
          %v723 = vsel %vm639, %v707, 0.0
          %724 = vadd.xlane.f32.xlu0 %v708
          %v725 = vpop.xlane.xlu0 %724
          %726 = vadd.xlane.f32.xlu0 %v709
          %v727 = vpop.xlane.xlu0 %726
          %728 = vadd.xlane.f32.xlu0 %v710
          %v729 = vpop.xlane.xlu0 %728
          %730 = vadd.xlane.f32.xlu0 %v711
          %v731 = vpop.xlane.xlu0 %730
          %732 = vadd.xlane.f32.xlu0 %v712
          %v733 = vpop.xlane.xlu0 %732
          %734 = vadd.xlane.f32.xlu0 %v713
          %v735 = vpop.xlane.xlu0 %734
          %736 = vadd.xlane.f32.xlu0 %v714
          %v737 = vpop.xlane.xlu0 %736
          %738 = vadd.xlane.f32.xlu0 %v715
          %v739 = vpop.xlane.xlu0 %738
          %740 = vadd.xlane.f32.xlu0 %v716
          %v741 = vpop.xlane.xlu0 %740
          %742 = vadd.xlane.f32.xlu0 %v717
          %v743 = vpop.xlane.xlu0 %742
          %744 = vadd.xlane.f32.xlu0 %v718
          %v745 = vpop.xlane.xlu0 %744
          %746 = vadd.xlane.f32.xlu0 %v719
          %v747 = vpop.xlane.xlu0 %746
          %748 = vadd.xlane.f32.xlu0 %v720
          %v749 = vpop.xlane.xlu0 %748
          %750 = vadd.xlane.f32.xlu0 %v721
          %v751 = vpop.xlane.xlu0 %750
          %752 = vadd.xlane.f32.xlu0 %v722
          %v753 = vpop.xlane.xlu0 %752
          %754 = vadd.xlane.f32.xlu0 %v723
          %v755 = vpop.xlane.xlu0 %754
          %v756 = vadd.f32 %v591, %v725
          %v757 = vadd.f32 %v592, %v727
          %v758 = vadd.f32 %v593, %v729
          %v759 = vadd.f32 %v594, %v731
          %v760 = vadd.f32 %v595, %v733
          %v761 = vadd.f32 %v596, %v735
          %v762 = vadd.f32 %v597, %v737
          %v763 = vadd.f32 %v598, %v739
          %v764 = vadd.f32 %v599, %v741
          %v765 = vadd.f32 %v600, %v743
          %v766 = vadd.f32 %v601, %v745
          %v767 = vadd.f32 %v602, %v747
          %v768 = vadd.f32 %v603, %v749
          %v769 = vadd.f32 %v604, %v751
          %v770 = vadd.f32 %v605, %v753
          %v771 = vadd.f32 %v606, %v755
          %v772 = vadd.f32 %v607, %v611
        $region45: #{tpu_custom_call.1} parent=35 // loop_footer
          %s572 = sadd.s32 %s570, 1
        $region46: #{tpu_custom_call.1} parent=35 // loop_footer_branch
          %569 = sbr.rel target = $region42
        $region47: #{tpu_custom_call.1} parent=35 // loop_exit
          _
        %s773 = scalar_lea.vmem %s266, %s23
        %v774 = vld [vmem:[%s773] sm:$0x1]
        %s775 = scalar_lea.vmem %s270, %s23
        %v776 = vld [vmem:[%s775] sm:$0x1]
        %v777 = vsub.f32 0.0, %v774
        %v778 = vmul.f32 %v777, 1.442695
        %v779 = vpow.pop %v778
        %v780 = vadd.f32 %v779, 1.0
        %v781 = vrcp.pop %v780
        %v782 = vmul.f32 1.0, %v781
        %v783 = vsub.f32 %v776, %v782
        %v784 = vand.u32 2147483647, %v783
        %v785 = vlaneseq
        %v786 = vshrl.u32 %v785, 7
        %v787 = vsub.s32 0, %v786
        %v788 = vrot.slane %v784, %v787
        %vm789 = vcmp.gt.f32.partialorder %v788, %v457
        %vm790 = vcmp.gt.f32.partialorder %v788, %v462
        %vm791 = vcmp.gt.f32.partialorder %v788, %v467
        %vm792 = vcmp.gt.f32.partialorder %v788, %v472
        %vm793 = vcmp.gt.f32.partialorder %v788, %v477
        %vm794 = vcmp.gt.f32.partialorder %v788, %v482
        %vm795 = vcmp.gt.f32.partialorder %v788, %v487
        %vm796 = vcmp.gt.f32.partialorder %v788, %v492
        %vm797 = vcmp.gt.f32.partialorder %v788, %v497
        %vm798 = vcmp.gt.f32.partialorder %v788, %v502
        %vm799 = vcmp.gt.f32.partialorder %v788, %v507
        %vm800 = vcmp.gt.f32.partialorder %v788, %v512
        %vm801 = vcmp.gt.f32.partialorder %v788, %v517
        %vm802 = vcmp.gt.f32.partialorder %v788, %v522
        %vm803 = vcmp.gt.f32.partialorder %v788, %v527
        %vm804 = vcmp.gt.f32.partialorder %v788, %v532
        %vm805 = vcmp.eq.f32.partialorder %v788, %v457
        %vm806 = vcmp.eq.f32.partialorder %v788, %v462
        %vm807 = vcmp.eq.f32.partialorder %v788, %v467
        %vm808 = vcmp.eq.f32.partialorder %v788, %v472
        %vm809 = vcmp.eq.f32.partialorder %v788, %v477
        %vm810 = vcmp.eq.f32.partialorder %v788, %v482
        %vm811 = vcmp.eq.f32.partialorder %v788, %v487
        %vm812 = vcmp.eq.f32.partialorder %v788, %v492
        %vm813 = vcmp.eq.f32.partialorder %v788, %v497
        %vm814 = vcmp.eq.f32.partialorder %v788, %v502
        %vm815 = vcmp.eq.f32.partialorder %v788, %v507
        %vm816 = vcmp.eq.f32.partialorder %v788, %v512
        %vm817 = vcmp.eq.f32.partialorder %v788, %v517
        %vm818 = vcmp.eq.f32.partialorder %v788, %v522
        %vm819 = vcmp.eq.f32.partialorder %v788, %v527
        %vm820 = vcmp.eq.f32.partialorder %v788, %v532
        %vm821 = vmand %vm805, %vm553
        %vm822 = vmand %vm806, %vm554
        %vm823 = vmand %vm807, %vm555
        %vm824 = vmand %vm808, %vm556
        %vm825 = vmand %vm809, %vm557
        %vm826 = vmand %vm810, %vm558
        %vm827 = vmand %vm811, %vm559
        %vm828 = vmand %vm812, %vm560
        %vm829 = vmand %vm813, %vm561
        %vm830 = vmand %vm814, %vm562
        %vm831 = vmand %vm815, %vm563
        %vm832 = vmand %vm816, %vm564
        %vm833 = vmand %vm817, %vm565
        %vm834 = vmand %vm818, %vm566
        %vm835 = vmand %vm819, %vm567
        %vm836 = vmand %vm820, %vm568
        %vm837 = vmor %vm789, %vm821
        %vm838 = vmor %vm790, %vm822
        %vm839 = vmor %vm791, %vm823
        %vm840 = vmor %vm792, %vm824
        %vm841 = vmor %vm793, %vm825
        %vm842 = vmor %vm794, %vm826
        %vm843 = vmor %vm795, %vm827
        %vm844 = vmor %vm796, %vm828
        %vm845 = vmor %vm797, %vm829
        %vm846 = vmor %vm798, %vm830
        %vm847 = vmor %vm799, %vm831
        %vm848 = vmor %vm800, %vm832
        %vm849 = vmor %vm801, %vm833
        %vm850 = vmor %vm802, %vm834
        %vm851 = vmor %vm803, %vm835
        %vm852 = vmor %vm804, %vm836
        %v853 = vsel %vm837, 1.0, 0.0
        %v854 = vsel %vm838, 1.0, 0.0
        %v855 = vsel %vm839, 1.0, 0.0
        %v856 = vsel %vm840, 1.0, 0.0
        %v857 = vsel %vm841, 1.0, 0.0
        %v858 = vsel %vm842, 1.0, 0.0
        %v859 = vsel %vm843, 1.0, 0.0
        %v860 = vsel %vm844, 1.0, 0.0
        %v861 = vsel %vm845, 1.0, 0.0
        %v862 = vsel %vm846, 1.0, 0.0
        %v863 = vsel %vm847, 1.0, 0.0
        %v864 = vsel %vm848, 1.0, 0.0
        %v865 = vsel %vm849, 1.0, 0.0
        %v866 = vsel %vm850, 1.0, 0.0
        %v867 = vsel %vm851, 1.0, 0.0
        %v868 = vsel %vm852, 1.0, 0.0
        %869 = vadd.xlane.f32.xlu0 %v853
        %v870 = vpop.xlane.xlu0 %869
        %871 = vadd.xlane.f32.xlu0 %v854
        %v872 = vpop.xlane.xlu0 %871
        %873 = vadd.xlane.f32.xlu0 %v855
        %v874 = vpop.xlane.xlu0 %873
        %875 = vadd.xlane.f32.xlu0 %v856
        %v876 = vpop.xlane.xlu0 %875
        %877 = vadd.xlane.f32.xlu0 %v857
        %v878 = vpop.xlane.xlu0 %877
        %879 = vadd.xlane.f32.xlu0 %v858
        %v880 = vpop.xlane.xlu0 %879
        %881 = vadd.xlane.f32.xlu0 %v859
        %v882 = vpop.xlane.xlu0 %881
        %883 = vadd.xlane.f32.xlu0 %v860
        %v884 = vpop.xlane.xlu0 %883
        %885 = vadd.xlane.f32.xlu0 %v861
        %v886 = vpop.xlane.xlu0 %885
        %887 = vadd.xlane.f32.xlu0 %v862
        %v888 = vpop.xlane.xlu0 %887
        %889 = vadd.xlane.f32.xlu0 %v863
        %v890 = vpop.xlane.xlu0 %889
        %891 = vadd.xlane.f32.xlu0 %v864
        %v892 = vpop.xlane.xlu0 %891
        %893 = vadd.xlane.f32.xlu0 %v865
        %v894 = vpop.xlane.xlu0 %893
        %895 = vadd.xlane.f32.xlu0 %v866
        %v896 = vpop.xlane.xlu0 %895
        %897 = vadd.xlane.f32.xlu0 %v867
        %v898 = vpop.xlane.xlu0 %897
        %899 = vadd.xlane.f32.xlu0 %v868
        %v900 = vpop.xlane.xlu0 %899
        %v901 = vadd.f32 %v575, %v870
        %v902 = vadd.f32 %v576, %v872
        %v903 = vadd.f32 %v577, %v874
        %v904 = vadd.f32 %v578, %v876
        %v905 = vadd.f32 %v579, %v878
        %v906 = vadd.f32 %v580, %v880
        %v907 = vadd.f32 %v581, %v882
        %v908 = vadd.f32 %v582, %v884
        %v909 = vadd.f32 %v583, %v886
        %v910 = vadd.f32 %v584, %v888
        %v911 = vadd.f32 %v585, %v890
        %v912 = vadd.f32 %v586, %v892
        %v913 = vadd.f32 %v587, %v894
        %v914 = vadd.f32 %v588, %v896
        %v915 = vadd.f32 %v589, %v898
        %v916 = vadd.f32 %v590, %v900
        %v917 = vlaneseq
        %v918 = vshrl.u32 %v917, 7
        %v919 = vsub.s32 0, %v918
        %v920 = vrot.slane %v776, %v919
        %v921 = vsel %vm837, %v920, 0.0
        %v922 = vsel %vm838, %v920, 0.0
        %v923 = vsel %vm839, %v920, 0.0
        %v924 = vsel %vm840, %v920, 0.0
        %v925 = vsel %vm841, %v920, 0.0
        %v926 = vsel %vm842, %v920, 0.0
        %v927 = vsel %vm843, %v920, 0.0
        %v928 = vsel %vm844, %v920, 0.0
        %v929 = vsel %vm845, %v920, 0.0
        %v930 = vsel %vm846, %v920, 0.0
        %v931 = vsel %vm847, %v920, 0.0
        %v932 = vsel %vm848, %v920, 0.0
        %v933 = vsel %vm849, %v920, 0.0
        %v934 = vsel %vm850, %v920, 0.0
        %v935 = vsel %vm851, %v920, 0.0
        %v936 = vsel %vm852, %v920, 0.0
        %937 = vadd.xlane.f32.xlu0 %v921
        %v938 = vpop.xlane.xlu0 %937
        %939 = vadd.xlane.f32.xlu0 %v922
        %v940 = vpop.xlane.xlu0 %939
        %941 = vadd.xlane.f32.xlu0 %v923
        %v942 = vpop.xlane.xlu0 %941
        %943 = vadd.xlane.f32.xlu0 %v924
        %v944 = vpop.xlane.xlu0 %943
        %945 = vadd.xlane.f32.xlu0 %v925
        %v946 = vpop.xlane.xlu0 %945
        %947 = vadd.xlane.f32.xlu0 %v926
        %v948 = vpop.xlane.xlu0 %947
        %949 = vadd.xlane.f32.xlu0 %v927
        %v950 = vpop.xlane.xlu0 %949
        %951 = vadd.xlane.f32.xlu0 %v928
        %v952 = vpop.xlane.xlu0 %951
        %953 = vadd.xlane.f32.xlu0 %v929
        %v954 = vpop.xlane.xlu0 %953
        %955 = vadd.xlane.f32.xlu0 %v930
        %v956 = vpop.xlane.xlu0 %955
        %957 = vadd.xlane.f32.xlu0 %v931
        %v958 = vpop.xlane.xlu0 %957
        %959 = vadd.xlane.f32.xlu0 %v932
        %v960 = vpop.xlane.xlu0 %959
        %961 = vadd.xlane.f32.xlu0 %v933
        %v962 = vpop.xlane.xlu0 %961
        %963 = vadd.xlane.f32.xlu0 %v934
        %v964 = vpop.xlane.xlu0 %963
        %965 = vadd.xlane.f32.xlu0 %v935
        %v966 = vpop.xlane.xlu0 %965
        %967 = vadd.xlane.f32.xlu0 %v936
        %v968 = vpop.xlane.xlu0 %967
        %v969 = vadd.f32 %v591, %v938
        %v970 = vadd.f32 %v592, %v940
        %v971 = vadd.f32 %v593, %v942
        %v972 = vadd.f32 %v594, %v944
        %v973 = vadd.f32 %v595, %v946
        %v974 = vadd.f32 %v596, %v948
        %v975 = vadd.f32 %v597, %v950
        %v976 = vadd.f32 %v598, %v952
        %v977 = vadd.f32 %v599, %v954
        %v978 = vadd.f32 %v600, %v956
        %v979 = vadd.f32 %v601, %v958
        %v980 = vadd.f32 %v602, %v960
        %v981 = vadd.f32 %v603, %v962
        %v982 = vadd.f32 %v604, %v964
        %v983 = vadd.f32 %v605, %v966
        %v984 = vadd.f32 %v606, %v968
        %v985 = vadd.f32 %v607, %v776
        %s986 = sadd.s32 %s23, 1
        // While loop
        $region48: #{tpu_custom_call.1} parent=35 // loop_pre_header
          _
        $region49: #{tpu_custom_call.1} parent=35 // loop_header
          %s988 = sphi %s986, %s990
          %p989 = scmp.ge.s32.totalorder %s988, 2
          %v993 = vphi %v901, %v1106
          %v994 = vphi %v902, %v1107
          %v995 = vphi %v903, %v1108
          %v996 = vphi %v904, %v1109
          %v997 = vphi %v905, %v1110
          %v998 = vphi %v906, %v1111
          %v999 = vphi %v907, %v1112
          %v1000 = vphi %v908, %v1113
          %v1001 = vphi %v909, %v1114
          %v1002 = vphi %v910, %v1115
          %v1003 = vphi %v911, %v1116
          %v1004 = vphi %v912, %v1117
          %v1005 = vphi %v913, %v1118
          %v1006 = vphi %v914, %v1119
          %v1007 = vphi %v915, %v1120
          %v1008 = vphi %v916, %v1121
          %v1009 = vphi %v969, %v1174
          %v1010 = vphi %v970, %v1175
          %v1011 = vphi %v971, %v1176
          %v1012 = vphi %v972, %v1177
          %v1013 = vphi %v973, %v1178
          %v1014 = vphi %v974, %v1179
          %v1015 = vphi %v975, %v1180
          %v1016 = vphi %v976, %v1181
          %v1017 = vphi %v977, %v1182
          %v1018 = vphi %v978, %v1183
          %v1019 = vphi %v979, %v1184
          %v1020 = vphi %v980, %v1185
          %v1021 = vphi %v981, %v1186
          %v1022 = vphi %v982, %v1187
          %v1023 = vphi %v983, %v1188
          %v1024 = vphi %v984, %v1189
          %v1025 = vphi %v985, %v1190
        $region50: #{tpu_custom_call.1} parent=35 // loop_header_branch
          %992 = sbr.rel (%p989) target = $region54
        $region51: #{tpu_custom_call.1} parent=35 // loop_body
          %s1026 = scalar_lea.vmem %s266, %s988
          %v1027 = vld [vmem:[%s1026] sm:$0x1]
          %s1028 = scalar_lea.vmem %s270, %s988
          %v1029 = vld [vmem:[%s1028] sm:$0x1]
          %v1030 = vsub.f32 0.0, %v1027
          %v1031 = vmul.f32 %v1030, 1.442695
          %v1032 = vpow.pop %v1031
          %v1033 = vadd.f32 %v1032, 1.0
          %v1034 = vrcp.pop %v1033
          %v1035 = vmul.f32 1.0, %v1034
          %v1036 = vsub.f32 %v1029, %v1035
          %v1037 = vand.u32 2147483647, %v1036
          %v1038 = vlaneseq
          %v1039 = vshrl.u32 %v1038, 7
          %v1040 = vsub.s32 0, %v1039
          %v1041 = vrot.slane %v1037, %v1040
          %vm1042 = vcmp.gt.f32.partialorder %v1041, %v457
          %vm1043 = vcmp.gt.f32.partialorder %v1041, %v462
          %vm1044 = vcmp.gt.f32.partialorder %v1041, %v467
          %vm1045 = vcmp.gt.f32.partialorder %v1041, %v472
          %vm1046 = vcmp.gt.f32.partialorder %v1041, %v477
          %vm1047 = vcmp.gt.f32.partialorder %v1041, %v482
          %vm1048 = vcmp.gt.f32.partialorder %v1041, %v487
          %vm1049 = vcmp.gt.f32.partialorder %v1041, %v492
          %vm1050 = vcmp.gt.f32.partialorder %v1041, %v497
          %vm1051 = vcmp.gt.f32.partialorder %v1041, %v502
          %vm1052 = vcmp.gt.f32.partialorder %v1041, %v507
          %vm1053 = vcmp.gt.f32.partialorder %v1041, %v512
          %vm1054 = vcmp.gt.f32.partialorder %v1041, %v517
          %vm1055 = vcmp.gt.f32.partialorder %v1041, %v522
          %vm1056 = vcmp.gt.f32.partialorder %v1041, %v527
          %vm1057 = vcmp.gt.f32.partialorder %v1041, %v532
          %v1058 = vsel %vm1042, 1.0, 0.0
          %v1059 = vsel %vm1043, 1.0, 0.0
          %v1060 = vsel %vm1044, 1.0, 0.0
          %v1061 = vsel %vm1045, 1.0, 0.0
          %v1062 = vsel %vm1046, 1.0, 0.0
          %v1063 = vsel %vm1047, 1.0, 0.0
          %v1064 = vsel %vm1048, 1.0, 0.0
          %v1065 = vsel %vm1049, 1.0, 0.0
          %v1066 = vsel %vm1050, 1.0, 0.0
          %v1067 = vsel %vm1051, 1.0, 0.0
          %v1068 = vsel %vm1052, 1.0, 0.0
          %v1069 = vsel %vm1053, 1.0, 0.0
          %v1070 = vsel %vm1054, 1.0, 0.0
          %v1071 = vsel %vm1055, 1.0, 0.0
          %v1072 = vsel %vm1056, 1.0, 0.0
          %v1073 = vsel %vm1057, 1.0, 0.0
          %1074 = vadd.xlane.f32.xlu0 %v1058
          %v1075 = vpop.xlane.xlu0 %1074
          %1076 = vadd.xlane.f32.xlu0 %v1059
          %v1077 = vpop.xlane.xlu0 %1076
          %1078 = vadd.xlane.f32.xlu0 %v1060
          %v1079 = vpop.xlane.xlu0 %1078
          %1080 = vadd.xlane.f32.xlu0 %v1061
          %v1081 = vpop.xlane.xlu0 %1080
          %1082 = vadd.xlane.f32.xlu0 %v1062
          %v1083 = vpop.xlane.xlu0 %1082
          %1084 = vadd.xlane.f32.xlu0 %v1063
          %v1085 = vpop.xlane.xlu0 %1084
          %1086 = vadd.xlane.f32.xlu0 %v1064
          %v1087 = vpop.xlane.xlu0 %1086
          %1088 = vadd.xlane.f32.xlu0 %v1065
          %v1089 = vpop.xlane.xlu0 %1088
          %1090 = vadd.xlane.f32.xlu0 %v1066
          %v1091 = vpop.xlane.xlu0 %1090
          %1092 = vadd.xlane.f32.xlu0 %v1067
          %v1093 = vpop.xlane.xlu0 %1092
          %1094 = vadd.xlane.f32.xlu0 %v1068
          %v1095 = vpop.xlane.xlu0 %1094
          %1096 = vadd.xlane.f32.xlu0 %v1069
          %v1097 = vpop.xlane.xlu0 %1096
          %1098 = vadd.xlane.f32.xlu0 %v1070
          %v1099 = vpop.xlane.xlu0 %1098
          %1100 = vadd.xlane.f32.xlu0 %v1071
          %v1101 = vpop.xlane.xlu0 %1100
          %1102 = vadd.xlane.f32.xlu0 %v1072
          %v1103 = vpop.xlane.xlu0 %1102
          %1104 = vadd.xlane.f32.xlu0 %v1073
          %v1105 = vpop.xlane.xlu0 %1104
          %v1106 = vadd.f32 %v993, %v1075
          %v1107 = vadd.f32 %v994, %v1077
          %v1108 = vadd.f32 %v995, %v1079
          %v1109 = vadd.f32 %v996, %v1081
          %v1110 = vadd.f32 %v997, %v1083
          %v1111 = vadd.f32 %v998, %v1085
          %v1112 = vadd.f32 %v999, %v1087
          %v1113 = vadd.f32 %v1000, %v1089
          %v1114 = vadd.f32 %v1001, %v1091
          %v1115 = vadd.f32 %v1002, %v1093
          %v1116 = vadd.f32 %v1003, %v1095
          %v1117 = vadd.f32 %v1004, %v1097
          %v1118 = vadd.f32 %v1005, %v1099
          %v1119 = vadd.f32 %v1006, %v1101
          %v1120 = vadd.f32 %v1007, %v1103
          %v1121 = vadd.f32 %v1008, %v1105
          %v1122 = vlaneseq
          %v1123 = vshrl.u32 %v1122, 7
          %v1124 = vsub.s32 0, %v1123
          %v1125 = vrot.slane %v1029, %v1124
          %v1126 = vsel %vm1042, %v1125, 0.0
          %v1127 = vsel %vm1043, %v1125, 0.0
          %v1128 = vsel %vm1044, %v1125, 0.0
          %v1129 = vsel %vm1045, %v1125, 0.0
          %v1130 = vsel %vm1046, %v1125, 0.0
          %v1131 = vsel %vm1047, %v1125, 0.0
          %v1132 = vsel %vm1048, %v1125, 0.0
          %v1133 = vsel %vm1049, %v1125, 0.0
          %v1134 = vsel %vm1050, %v1125, 0.0
          %v1135 = vsel %vm1051, %v1125, 0.0
          %v1136 = vsel %vm1052, %v1125, 0.0
          %v1137 = vsel %vm1053, %v1125, 0.0
          %v1138 = vsel %vm1054, %v1125, 0.0
          %v1139 = vsel %vm1055, %v1125, 0.0
          %v1140 = vsel %vm1056, %v1125, 0.0
          %v1141 = vsel %vm1057, %v1125, 0.0
          %1142 = vadd.xlane.f32.xlu0 %v1126
          %v1143 = vpop.xlane.xlu0 %1142
          %1144 = vadd.xlane.f32.xlu0 %v1127
          %v1145 = vpop.xlane.xlu0 %1144
          %1146 = vadd.xlane.f32.xlu0 %v1128
          %v1147 = vpop.xlane.xlu0 %1146
          %1148 = vadd.xlane.f32.xlu0 %v1129
          %v1149 = vpop.xlane.xlu0 %1148
          %1150 = vadd.xlane.f32.xlu0 %v1130
          %v1151 = vpop.xlane.xlu0 %1150
          %1152 = vadd.xlane.f32.xlu0 %v1131
          %v1153 = vpop.xlane.xlu0 %1152
          %1154 = vadd.xlane.f32.xlu0 %v1132
          %v1155 = vpop.xlane.xlu0 %1154
          %1156 = vadd.xlane.f32.xlu0 %v1133
          %v1157 = vpop.xlane.xlu0 %1156
          %1158 = vadd.xlane.f32.xlu0 %v1134
          %v1159 = vpop.xlane.xlu0 %1158
          %1160 = vadd.xlane.f32.xlu0 %v1135
          %v1161 = vpop.xlane.xlu0 %1160
          %1162 = vadd.xlane.f32.xlu0 %v1136
          %v1163 = vpop.xlane.xlu0 %1162
          %1164 = vadd.xlane.f32.xlu0 %v1137
          %v1165 = vpop.xlane.xlu0 %1164
          %1166 = vadd.xlane.f32.xlu0 %v1138
          %v1167 = vpop.xlane.xlu0 %1166
          %1168 = vadd.xlane.f32.xlu0 %v1139
          %v1169 = vpop.xlane.xlu0 %1168
          %1170 = vadd.xlane.f32.xlu0 %v1140
          %v1171 = vpop.xlane.xlu0 %1170
          %1172 = vadd.xlane.f32.xlu0 %v1141
          %v1173 = vpop.xlane.xlu0 %1172
          %v1174 = vadd.f32 %v1009, %v1143
          %v1175 = vadd.f32 %v1010, %v1145
          %v1176 = vadd.f32 %v1011, %v1147
          %v1177 = vadd.f32 %v1012, %v1149
          %v1178 = vadd.f32 %v1013, %v1151
          %v1179 = vadd.f32 %v1014, %v1153
          %v1180 = vadd.f32 %v1015, %v1155
          %v1181 = vadd.f32 %v1016, %v1157
          %v1182 = vadd.f32 %v1017, %v1159
          %v1183 = vadd.f32 %v1018, %v1161
          %v1184 = vadd.f32 %v1019, %v1163
          %v1185 = vadd.f32 %v1020, %v1165
          %v1186 = vadd.f32 %v1021, %v1167
          %v1187 = vadd.f32 %v1022, %v1169
          %v1188 = vadd.f32 %v1023, %v1171
          %v1189 = vadd.f32 %v1024, %v1173
          %v1190 = vadd.f32 %v1025, %v1029
        $region52: #{tpu_custom_call.1} parent=35 // loop_footer
          %s990 = sadd.s32 %s988, 1
        $region53: #{tpu_custom_call.1} parent=35 // loop_footer_branch
          %987 = sbr.rel target = $region49
        $region54: #{tpu_custom_call.1} parent=35 // loop_exit
          _
        %vm1191 = vcmask 1040384
        %v1192 = vsel %vm1191, %v1025, 0.0
        %1193 = vadd.xlane.f32.xlu0 %v1192
        %v1194 = vpop.xlane.xlu0 %1193
        %v1195 = vrot.slane %v1194, 4
        %v1196 = vadd.f32 %v1194, %v1195
        %v1197 = vrot.slane %v1196, 2
        %v1198 = vadd.f32 %v1196, %v1197
        %v1199 = vrot.slane %v1198, 1
        %v1200 = vadd.f32 %v1198, %v1199
        %s1201 = vtos %v1200
        %v1202 = vsub.f32 %v993, %v1009
        %v1203 = vsub.f32 %v994, %v1010
        %v1204 = vsub.f32 %v995, %v1011
        %v1205 = vsub.f32 %v996, %v1012
        %v1206 = vsub.f32 %v997, %v1013
        %v1207 = vsub.f32 %v998, %v1014
        %v1208 = vsub.f32 %v999, %v1015
        %v1209 = vsub.f32 %v1000, %v1016
        %v1210 = vsub.f32 %v1001, %v1017
        %v1211 = vsub.f32 %v1002, %v1018
        %v1212 = vsub.f32 %v1003, %v1019
        %v1213 = vsub.f32 %v1004, %v1020
        %v1214 = vsub.f32 %v1005, %v1021
        %v1215 = vsub.f32 %v1006, %v1022
        %v1216 = vsub.f32 %v1007, %v1023
        %v1217 = vsub.f32 %v1008, %v1024
        %v1218 = vstv %s1201
        %v1219 = vsub.f32 %v1218, %v1009
        %v1220 = vsub.f32 %v1218, %v1010
        %v1221 = vsub.f32 %v1218, %v1011
        %v1222 = vsub.f32 %v1218, %v1012
        %v1223 = vsub.f32 %v1218, %v1013
        %v1224 = vsub.f32 %v1218, %v1014
        %v1225 = vsub.f32 %v1218, %v1015
        %v1226 = vsub.f32 %v1218, %v1016
        %v1227 = vsub.f32 %v1218, %v1017
        %v1228 = vsub.f32 %v1218, %v1018
        %v1229 = vsub.f32 %v1218, %v1019
        %v1230 = vsub.f32 %v1218, %v1020
        %v1231 = vsub.f32 %v1218, %v1021
        %v1232 = vsub.f32 %v1218, %v1022
        %v1233 = vsub.f32 %v1218, %v1023
        %v1234 = vsub.f32 %v1218, %v1024
        %v1235 = vadd.f32 %v1218, %v1202
        %v1236 = vadd.f32 %v1218, %v1203
        %v1237 = vadd.f32 %v1218, %v1204
        %v1238 = vadd.f32 %v1218, %v1205
        %v1239 = vadd.f32 %v1218, %v1206
        %v1240 = vadd.f32 %v1218, %v1207
        %v1241 = vadd.f32 %v1218, %v1208
        %v1242 = vadd.f32 %v1218, %v1209
        %v1243 = vadd.f32 %v1218, %v1210
        %v1244 = vadd.f32 %v1218, %v1211
        %v1245 = vadd.f32 %v1218, %v1212
        %v1246 = vadd.f32 %v1218, %v1213
        %v1247 = vadd.f32 %v1218, %v1214
        %v1248 = vadd.f32 %v1218, %v1215
        %v1249 = vadd.f32 %v1218, %v1216
        %v1250 = vadd.f32 %v1218, %v1217
        %v1251 = vrcp.pop %v1235
        %v1252 = vmul.f32 %v1219, %v1251
        %v1253 = vrcp.pop %v1236
        %v1254 = vmul.f32 %v1220, %v1253
        %v1255 = vrcp.pop %v1237
        %v1256 = vmul.f32 %v1221, %v1255
        %v1257 = vrcp.pop %v1238
        %v1258 = vmul.f32 %v1222, %v1257
        %v1259 = vrcp.pop %v1239
        %v1260 = vmul.f32 %v1223, %v1259
        %v1261 = vrcp.pop %v1240
        %v1262 = vmul.f32 %v1224, %v1261
        %v1263 = vrcp.pop %v1241
        %v1264 = vmul.f32 %v1225, %v1263
        %v1265 = vrcp.pop %v1242
        %v1266 = vmul.f32 %v1226, %v1265
        %v1267 = vrcp.pop %v1243
        %v1268 = vmul.f32 %v1227, %v1267
        %v1269 = vrcp.pop %v1244
        %v1270 = vmul.f32 %v1228, %v1269
        %v1271 = vrcp.pop %v1245
        %v1272 = vmul.f32 %v1229, %v1271
        %v1273 = vrcp.pop %v1246
        %v1274 = vmul.f32 %v1230, %v1273
        %v1275 = vrcp.pop %v1247
        %v1276 = vmul.f32 %v1231, %v1275
        %v1277 = vrcp.pop %v1248
        %v1278 = vmul.f32 %v1232, %v1277
        %v1279 = vrcp.pop %v1249
        %v1280 = vmul.f32 %v1233, %v1279
        %v1281 = vrcp.pop %v1250
        %v1282 = vmul.f32 %v1234, %v1281
        %v1283 = vsub.f32 1.0, %v1252
        %v1284 = vsub.f32 1.0, %v1254
        %v1285 = vsub.f32 1.0, %v1256
        %v1286 = vsub.f32 1.0, %v1258
        %v1287 = vsub.f32 1.0, %v1260
        %v1288 = vsub.f32 1.0, %v1262
        %v1289 = vsub.f32 1.0, %v1264
        %v1290 = vsub.f32 1.0, %v1266
        %v1291 = vsub.f32 1.0, %v1268
        %v1292 = vsub.f32 1.0, %v1270
        %v1293 = vsub.f32 1.0, %v1272
        %v1294 = vsub.f32 1.0, %v1274
        %v1295 = vsub.f32 1.0, %v1276
        %v1296 = vsub.f32 1.0, %v1278
        %v1297 = vsub.f32 1.0, %v1280
        %v1298 = vsub.f32 1.0, %v1282
        %v1299 = vsub.f32 %v1009, %v310
        %v1300 = vsub.f32 %v1010, %v311
        %v1301 = vsub.f32 %v1011, %v312
        %v1302 = vsub.f32 %v1012, %v313
        %v1303 = vsub.f32 %v1013, %v314
        %v1304 = vsub.f32 %v1014, %v315
        %v1305 = vsub.f32 %v1015, %v316
        %v1306 = vsub.f32 %v1016, %v317
        %v1307 = vsub.f32 %v1017, %v318
        %v1308 = vsub.f32 %v1018, %v319
        %v1309 = vsub.f32 %v1019, %v320
        %v1310 = vsub.f32 %v1020, %v321
        %v1311 = vsub.f32 %v1021, %v322
        %v1312 = vsub.f32 %v1022, %v323
        %v1313 = vsub.f32 %v1023, %v324
        %v1314 = vsub.f32 %v1024, %v325
        %v1315 = vsub.f32 1.0, %v310
        %v1316 = vsub.f32 1.0, %v311
        %v1317 = vsub.f32 1.0, %v312
        %v1318 = vsub.f32 1.0, %v313
        %v1319 = vsub.f32 1.0, %v314
        %v1320 = vsub.f32 1.0, %v315
        %v1321 = vsub.f32 1.0, %v316
        %v1322 = vsub.f32 1.0, %v317
        %v1323 = vsub.f32 1.0, %v318
        %v1324 = vsub.f32 1.0, %v319
        %v1325 = vsub.f32 1.0, %v320
        %v1326 = vsub.f32 1.0, %v321
        %v1327 = vsub.f32 1.0, %v322
        %v1328 = vsub.f32 1.0, %v323
        %v1329 = vsub.f32 1.0, %v324
        %v1330 = vsub.f32 1.0, %v325
        %v1331 = vsub.f32 %v1202, %v1315
        %v1332 = vsub.f32 %v1203, %v1316
        %v1333 = vsub.f32 %v1204, %v1317
        %v1334 = vsub.f32 %v1205, %v1318
        %v1335 = vsub.f32 %v1206, %v1319
        %v1336 = vsub.f32 %v1207, %v1320
        %v1337 = vsub.f32 %v1208, %v1321
        %v1338 = vsub.f32 %v1209, %v1322
        %v1339 = vsub.f32 %v1210, %v1323
        %v1340 = vsub.f32 %v1211, %v1324
        %v1341 = vsub.f32 %v1212, %v1325
        %v1342 = vsub.f32 %v1213, %v1326
        %v1343 = vsub.f32 %v1214, %v1327
        %v1344 = vsub.f32 %v1215, %v1328
        %v1345 = vsub.f32 %v1216, %v1329
        %v1346 = vsub.f32 %v1217, %v1330
        %v1347 = vadd.f32 %v1218, %v1331
        %v1348 = vadd.f32 %v1218, %v1332
        %v1349 = vadd.f32 %v1218, %v1333
        %v1350 = vadd.f32 %v1218, %v1334
        %v1351 = vadd.f32 %v1218, %v1335
        %v1352 = vadd.f32 %v1218, %v1336
        %v1353 = vadd.f32 %v1218, %v1337
        %v1354 = vadd.f32 %v1218, %v1338
        %v1355 = vadd.f32 %v1218, %v1339
        %v1356 = vadd.f32 %v1218, %v1340
        %v1357 = vadd.f32 %v1218, %v1341
        %v1358 = vadd.f32 %v1218, %v1342
        %v1359 = vadd.f32 %v1218, %v1343
        %v1360 = vadd.f32 %v1218, %v1344
        %v1361 = vadd.f32 %v1218, %v1345
        %v1362 = vadd.f32 %v1218, %v1346
        %vm1363 = vcmp.gt.f32.partialorder %v1347, 0.0
        %vm1364 = vcmp.gt.f32.partialorder %v1348, 0.0
        %vm1365 = vcmp.gt.f32.partialorder %v1349, 0.0
        %vm1366 = vcmp.gt.f32.partialorder %v1350, 0.0
        %vm1367 = vcmp.gt.f32.partialorder %v1351, 0.0
        %vm1368 = vcmp.gt.f32.partialorder %v1352, 0.0
        %vm1369 = vcmp.gt.f32.partialorder %v1353, 0.0
        %vm1370 = vcmp.gt.f32.partialorder %v1354, 0.0
        %vm1371 = vcmp.gt.f32.partialorder %v1355, 0.0
        %vm1372 = vcmp.gt.f32.partialorder %v1356, 0.0
        %vm1373 = vcmp.gt.f32.partialorder %v1357, 0.0
        %vm1374 = vcmp.gt.f32.partialorder %v1358, 0.0
        %vm1375 = vcmp.gt.f32.partialorder %v1359, 0.0
        %vm1376 = vcmp.gt.f32.partialorder %v1360, 0.0
        %vm1377 = vcmp.gt.f32.partialorder %v1361, 0.0
        %vm1378 = vcmp.gt.f32.partialorder %v1362, 0.0
        %v1379 = vsub.f32 %v1218, %v1299
        %v1380 = vsub.f32 %v1218, %v1300
        %v1381 = vsub.f32 %v1218, %v1301
        %v1382 = vsub.f32 %v1218, %v1302
        %v1383 = vsub.f32 %v1218, %v1303
        %v1384 = vsub.f32 %v1218, %v1304
        %v1385 = vsub.f32 %v1218, %v1305
        %v1386 = vsub.f32 %v1218, %v1306
        %v1387 = vsub.f32 %v1218, %v1307
        %v1388 = vsub.f32 %v1218, %v1308
        %v1389 = vsub.f32 %v1218, %v1309
        %v1390 = vsub.f32 %v1218, %v1310
        %v1391 = vsub.f32 %v1218, %v1311
        %v1392 = vsub.f32 %v1218, %v1312
        %v1393 = vsub.f32 %v1218, %v1313
        %v1394 = vsub.f32 %v1218, %v1314
        %v1395 = vrcp.pop %v1347
        %v1396 = vmul.f32 %v1379, %v1395
        %v1397 = vrcp.pop %v1348
        %v1398 = vmul.f32 %v1380, %v1397
        %v1399 = vrcp.pop %v1349
        %v1400 = vmul.f32 %v1381, %v1399
        %v1401 = vrcp.pop %v1350
        %v1402 = vmul.f32 %v1382, %v1401
        %v1403 = vrcp.pop %v1351
        %v1404 = vmul.f32 %v1383, %v1403
        %v1405 = vrcp.pop %v1352
        %v1406 = vmul.f32 %v1384, %v1405
        %v1407 = vrcp.pop %v1353
        %v1408 = vmul.f32 %v1385, %v1407
        %v1409 = vrcp.pop %v1354
        %v1410 = vmul.f32 %v1386, %v1409
        %v1411 = vrcp.pop %v1355
        %v1412 = vmul.f32 %v1387, %v1411
        %v1413 = vrcp.pop %v1356
        %v1414 = vmul.f32 %v1388, %v1413
        %v1415 = vrcp.pop %v1357
        %v1416 = vmul.f32 %v1389, %v1415
        %v1417 = vrcp.pop %v1358
        %v1418 = vmul.f32 %v1390, %v1417
        %v1419 = vrcp.pop %v1359
        %v1420 = vmul.f32 %v1391, %v1419
        %v1421 = vrcp.pop %v1360
        %v1422 = vmul.f32 %v1392, %v1421
        %v1423 = vrcp.pop %v1361
        %v1424 = vmul.f32 %v1393, %v1423
        %v1425 = vrcp.pop %v1362
        %v1426 = vmul.f32 %v1394, %v1425
        %v1427 = vsub.f32 1.0, %v1396
        %v1428 = vsub.f32 1.0, %v1398
        %v1429 = vsub.f32 1.0, %v1400
        %v1430 = vsub.f32 1.0, %v1402
        %v1431 = vsub.f32 1.0, %v1404
        %v1432 = vsub.f32 1.0, %v1406
        %v1433 = vsub.f32 1.0, %v1408
        %v1434 = vsub.f32 1.0, %v1410
        %v1435 = vsub.f32 1.0, %v1412
        %v1436 = vsub.f32 1.0, %v1414
        %v1437 = vsub.f32 1.0, %v1416
        %v1438 = vsub.f32 1.0, %v1418
        %v1439 = vsub.f32 1.0, %v1420
        %v1440 = vsub.f32 1.0, %v1422
        %v1441 = vsub.f32 1.0, %v1424
        %v1442 = vsub.f32 1.0, %v1426
        %v1443 = vsel %vm1363, %v1427, 0.0
        %v1444 = vsel %vm1364, %v1428, 0.0
        %v1445 = vsel %vm1365, %v1429, 0.0
        %v1446 = vsel %vm1366, %v1430, 0.0
        %v1447 = vsel %vm1367, %v1431, 0.0
        %v1448 = vsel %vm1368, %v1432, 0.0
        %v1449 = vsel %vm1369, %v1433, 0.0
        %v1450 = vsel %vm1370, %v1434, 0.0
        %v1451 = vsel %vm1371, %v1435, 0.0
        %v1452 = vsel %vm1372, %v1436, 0.0
        %v1453 = vsel %vm1373, %v1437, 0.0
        %v1454 = vsel %vm1374, %v1438, 0.0
        %v1455 = vsel %vm1375, %v1439, 0.0
        %v1456 = vsel %vm1376, %v1440, 0.0
        %v1457 = vsel %vm1377, %v1441, 0.0
        %v1458 = vsel %vm1378, %v1442, 0.0
        %v1459 = vsub.f32 %v1283, %v1443
        %v1460 = vsub.f32 %v1284, %v1444
        %v1461 = vsub.f32 %v1285, %v1445
        %v1462 = vsub.f32 %v1286, %v1446
        %v1463 = vsub.f32 %v1287, %v1447
        %v1464 = vsub.f32 %v1288, %v1448
        %v1465 = vsub.f32 %v1289, %v1449
        %v1466 = vsub.f32 %v1290, %v1450
        %v1467 = vsub.f32 %v1291, %v1451
        %v1468 = vsub.f32 %v1292, %v1452
        %v1469 = vsub.f32 %v1293, %v1453
        %v1470 = vsub.f32 %v1294, %v1454
        %v1471 = vsub.f32 %v1295, %v1455
        %v1472 = vsub.f32 %v1296, %v1456
        %v1473 = vsub.f32 %v1297, %v1457
        %v1474 = vsub.f32 %v1298, %v1458
        %v1475 = vmul.f32 %v438, %v1459
        %v1476 = vmul.f32 %v439, %v1460
        %v1477 = vmul.f32 %v440, %v1461
        %v1478 = vmul.f32 %v441, %v1462
        %v1479 = vmul.f32 %v442, %v1463
        %v1480 = vmul.f32 %v443, %v1464
        %v1481 = vmul.f32 %v444, %v1465
        %v1482 = vmul.f32 %v445, %v1466
        %v1483 = vmul.f32 %v446, %v1467
        %v1484 = vmul.f32 %v447, %v1468
        %v1485 = vmul.f32 %v448, %v1469
        %v1486 = vmul.f32 %v449, %v1470
        %v1487 = vmul.f32 %v450, %v1471
        %v1488 = vmul.f32 %v451, %v1472
        %v1489 = vmul.f32 %v452, %v1473
        %v1490 = vmul.f32 %v453, %v1474
        %vm1491 = vcmask 7168
        %v1492 = vsel %vm1491, %v1475, 0.0
        %v1493 = vsel %vm1491, %v1476, 0.0
        %v1494 = vadd.f32 %v1492, %v1493
        %v1495 = vsel %vm1491, %v1477, 0.0
        %v1496 = vadd.f32 %v1494, %v1495
        %v1497 = vsel %vm1491, %v1478, 0.0
        %v1498 = vadd.f32 %v1496, %v1497
        %v1499 = vsel %vm1491, %v1479, 0.0
        %v1500 = vadd.f32 %v1498, %v1499
        %v1501 = vsel %vm1491, %v1480, 0.0
        %v1502 = vadd.f32 %v1500, %v1501
        %v1503 = vsel %vm1491, %v1481, 0.0
        %v1504 = vadd.f32 %v1502, %v1503
        %v1505 = vsel %vm1491, %v1482, 0.0
        %v1506 = vadd.f32 %v1504, %v1505
        %v1507 = vsel %vm1491, %v1483, 0.0
        %v1508 = vadd.f32 %v1506, %v1507
        %v1509 = vsel %vm1491, %v1484, 0.0
        %v1510 = vadd.f32 %v1508, %v1509
        %v1511 = vsel %vm1491, %v1485, 0.0
        %v1512 = vadd.f32 %v1510, %v1511
        %v1513 = vsel %vm1491, %v1486, 0.0
        %v1514 = vadd.f32 %v1512, %v1513
        %v1515 = vsel %vm1491, %v1487, 0.0
        %v1516 = vadd.f32 %v1514, %v1515
        %v1517 = vsel %vm1491, %v1488, 0.0
        %v1518 = vadd.f32 %v1516, %v1517
        %v1519 = vsel %vm1491, %v1489, 0.0
        %v1520 = vadd.f32 %v1518, %v1519
        %v1521 = vsel %vm1491, %v1490, 0.0
        %v1522 = vadd.f32 %v1520, %v1521
        %1523 = vadd.xlane.f32.xlu0 %v1522
        %v1524 = vpop.xlane.xlu0 %1523
        %v1525 = vrot.slane %v1524, 4
        %v1526 = vadd.f32 %v1524, %v1525
        %v1527 = vrot.slane %v1526, 2
        %v1528 = vadd.f32 %v1526, %v1527
        %v1529 = vrot.slane %v1528, 1
        %v1530 = vadd.f32 %v1528, %v1529
        %s1531 = vtos %v1530
        %v1532 = vld [vmem:[%s262] sm:$0x1]
        %v1533 = vstv %s1531
        %v1534 = vadd.f32 %v1532, %v1533
        %1535 = vst [vmem:[%s262] sm:$0x1] %v1534
        %s1536 = sand.u32 %s146, 1
        %s1537 = scalar_lea.sflag [#allocation3], %s1536
        %s1538 = sand.u32 %s146, 1
        %s1539 = scalar_lea.vmem [#allocation2], %s1538
        // Predicated region
        $region55: #{tpu_custom_call.1} parent=35 // pred_check
          %p1540 = pneg %p156
        $region56: #{tpu_custom_call.1} parent=35 // pred_check_branch
          %1542 = sbr.rel (%p1540) target = $region58
        $region57: #{tpu_custom_call.1} parent=35 // pred_region
          %s1544 = ssub.s32 16, 16
          %1545 = vsyncadd %s1537, %s1544
          %s1546 = smul.addr %s22, 16
          %s1547 = scalar_lea.hbm %s4, %s1546
          %s1549 = sshll.u32 %s1539, 4
          %s1550 = int_to_ptr.vmem [resolvable:$true] %s1549
          %1552 = dma.vmem_to_hbm [thread:$0]  %s1550, 16, %s1547, %s1537
        $region58: #{tpu_custom_call.1} parent=35 // pred_fallthru
          _
      $region36: #{tpu_custom_call.1} parent=5 // pred_fallthru
        _
      %p1553 = scmp.le.s32.totalorder 2, %s13
      // Predicated region
      $region59: #{tpu_custom_call.1} parent=5 // pred_check
        %p1554 = pneg %p1553
      $region60: #{tpu_custom_call.1} parent=5 // pred_check_branch
        %1556 = sbr.rel (%p1554) target = $region62
      $region61: #{tpu_custom_call.1} parent=5 // pred_region
        %s1557 = ssub.s32 %s13, 2
        // Predicated region
        $region63: #{tpu_custom_call.1} parent=61 // pred_check
          %p1558 = pneg %p162
        $region64: #{tpu_custom_call.1} parent=61 // pred_check_branch
          %1560 = sbr.rel (%p1558) target = $region66
        $region65: #{tpu_custom_call.1} parent=61 // pred_region
          %s1561 = sand.u32 %s147, 1
          %s1562 = scalar_lea.sflag [#allocation3], %s1561
          %s1563 = sand.u32 %s147, 1
          %s1564 = scalar_lea.vmem [#allocation2], %s1563
          %1565 = dma.done %s1562, 16
        $region66: #{tpu_custom_call.1} parent=61 // pred_fallthru
          _
      $region62: #{tpu_custom_call.1} parent=5 // pred_fallthru
        _
    $region6: #{tpu_custom_call.1} parent=1 // loop_footer
      %s17 = sadd.s32 1, %s13
    $region7: #{tpu_custom_call.1} parent=1 // loop_footer_branch
      %12 = sbr.rel target = $region3
    $region8: #{tpu_custom_call.1} parent=1 // loop_exit
      _
    %1566 = vsyncpa [#allocation3], 1
    %s1567 = scalar_lea.sflag [#allocation3], 1
    %1568 = vsyncpa %s1567, 1

</llo_original>
